<compile_context>
chip_gen: v7x
topology: tpu7x:2x2x1
jax: 0.10.0
libtpu: 0.0.40
codegen_flags: <defaults>
</compile_context>

<pallas_src>
import jax
import jax.numpy as jnp
import numpy as np
from jax import lax
from jax.experimental import pallas as pl
from jax.experimental.pallas import tpu as pltpu


def q_critic_kernel(x_ref, a_ref, wih_ref, whh_ref, w1h_ref, w1a_ref,
                    vec_ref, b2_ref, out_ref):
    T, B, D = x_ref.shape
    H = whh_ref.shape[0]
    NW = w1h_ref.shape[1]

    # Packed row vectors (single DMA): [ b_lstm | b1 | w2_row | pad ].
    b_lstm = vec_ref[:, 0:4 * H]                        # [1, 4H] (g slice x2)
    b1 = vec_ref[:, 4 * H:4 * H + NW]                   # [1, NW]
    w2row = vec_ref[:, 4 * H + NW:4 * H + 2 * NW]       # [1, NW]

    # Hoisted full-sequence input projection (bias folded in once):
    # one [T*B, D] @ [D, 4H] MXU matmul instead of T small ones in the loop.
    x_all = x_ref[...].reshape(T * B, D)
    xp = (jnp.dot(x_all, wih_ref[...], preferred_element_type=jnp.float32)
          + b_lstm)                                     # [T*B, 4H]
    xp = xp.reshape(T, B, 4 * H)

    # Action branch of fc1: independent of h, so its MXU push hides under the
    # latency-bound recurrence.
    za = (jnp.dot(a_ref[...], w1a_ref[...], preferred_element_type=jnp.float32)
          + b1)                                         # [B, NW]

    whh = whh_ref[...]                                  # [H, 4H]

    def step(xp_t, h, c):
        gates = xp_t + jnp.dot(h, whh, preferred_element_type=jnp.float32)
        # Single full-vreg sigmoid; g-gate columns were pre-scaled by 2 in
        # make_params so tanh(g) == 2*sigmoid(2g) - 1 (one fewer EUP push on
        # the serial critical path every step).
        sig = jax.nn.sigmoid(gates)
        i_g = sig[:, 0 * H:1 * H]
        f_g = sig[:, 1 * H:2 * H]
        g_g = 2.0 * sig[:, 2 * H:3 * H] - 1.0
        o_g = sig[:, 3 * H:4 * H]
        c = f_g * c + i_g * g_g
        h = o_g * jnp.tanh(c)
        return h, c

    h = jnp.zeros((B, H), jnp.float32)
    c = jnp.zeros((B, H), jnp.float32)
    if B <= 64:
        # Small batch tile: fully unroll so cross-step MXU/EUP work overlaps.
        for t in range(T):
            h, c = step(xp[t], h, c)
    else:
        # Large tile: bound live ranges with fori_loop instead of shrinking it.
        def body(t, hc):
            hh, cc = hc
            xp_t = lax.dynamic_index_in_dim(xp, t, axis=0, keepdims=False)
            return step(xp_t, hh, cc)
        h, c = lax.fori_loop(0, T, body, (h, c))

    # fc1 on concat([h, action]) == h @ W1_h + (a @ W1_a + b1)  (latter hoisted)
    z = jnp.maximum(
        jnp.dot(h, w1h_ref[...], preferred_element_type=jnp.float32) + za, 0.0)

    # fc2 as VPU multiply + lane reduce (w2 is a single row), stored lane-dense.
    q = jnp.sum(z * w2row, axis=-1) + b2_ref[0]         # [B]
    out_ref[...] = q.reshape(1, 1, B)


def _pick_block_b(B):
    # v7x has 2 TensorCores per chip: prefer >= 2 sublane-aligned batch tiles
    # once B >= 16 so dimension_semantics=("parallel",) can shard them.  The
    # extra grid step costs ~0.35us on single-TC v5e/v6e (pass block_b=B there
    # to force one big tile if that matters).
    if B < 16 or B % 8 != 0:
        return B                     # single full tile: always a legal block
    best = 8
    for bb in range(8, min(128, B // 2) + 1, 8):
        if B % bb == 0:
            best = bb
    return best


def q_critic_forward(state_seq, action, params, *, block_b=None):
    """state_seq: [B, T, D], action: [B, A] -> [B] (matches PyTorch squeeze(1))."""
    B, T, D = state_seq.shape
    A = action.shape[1]
    H = params["whh_t"].shape[0]
    NW = params["w1h_t"].shape[1]
    P = params["packed"].shape[1]

    if block_b is None:
        block_b = _pick_block_b(B)
    assert B % block_b == 0, "batch must be divisible by block_b"
    nb = B // block_b
    assert nb == 1 or block_b % 8 == 0, \
        "batch tiles must be sublane-aligned (block_b % 8 == 0) when tiling"

    # TODO(synk): producer could emit time-major data directly; this transpose
    # is a tiny separate XLA op (negligible at these sizes).
    x_tm = jnp.transpose(state_seq, (1, 0, 2))           # [T, B, D]

    w = lambda i: (0, 0)                                  # broadcast weights
    out = pl.pallas_call(
        q_critic_kernel,
        out_shape=jax.ShapeDtypeStruct((nb, 1, block_b), jnp.float32),
        grid=(nb,),
        in_specs=[
            pl.BlockSpec((T, block_b, D), lambda i: (0, i, 0)),   # x time-major
            pl.BlockSpec((block_b, A), lambda i: (i, 0)),         # action
            pl.BlockSpec((D, 4 * H), w),                          # W_ih^T (g x2)
            pl.BlockSpec((H, 4 * H), w),                          # W_hh^T (g x2)
            pl.BlockSpec((H, NW), w),                             # W1_h^T
            pl.BlockSpec((A, NW), w),                             # W1_a^T
            pl.BlockSpec((1, P), w),                              # packed rows
            pl.BlockSpec(memory_space=pltpu.MemorySpace.SMEM),    # b2 scalar
        ],
        out_specs=pl.BlockSpec((1, 1, block_b), lambda i: (i, 0, 0)),
        compiler_params=pltpu.CompilerParams(
            dimension_semantics=("parallel",)),
    )(x_tm, action,
      params["wih_t"], params["whh_t"], params["w1h_t"], params["w1a_t"],
      params["packed"], params["b2"])
    return out.reshape(B)


def make_params(key, state_dim, hidden, action_dim, net_width):
    ks = jax.random.split(key, 8)
    u = lambda k, shape, s: jax.random.uniform(k, shape, jnp.float32, -s, s)
    s_l = 1.0 / np.sqrt(hidden)
    s_1 = 1.0 / np.sqrt(hidden + action_dim)
    s_2 = 1.0 / np.sqrt(net_width)
    # PyTorch-style weights, then pre-transpose / split / pre-scale for kernel.
    w_ih = u(ks[0], (4 * hidden, state_dim), s_l)   # [4H, D]
    w_hh = u(ks[1], (4 * hidden, hidden), s_l)      # [4H, H]
    b_ih = u(ks[2], (4 * hidden,), s_l)
    b_hh = u(ks[3], (4 * hidden,), s_l)
    w1 = u(ks[4], (net_width, hidden + action_dim), s_1)  # [NW, H+A]
    b1 = u(ks[5], (net_width,), s_1)
    w2 = u(ks[6], (1, net_width), s_2)              # [1, NW]
    b2 = u(ks[7], (1,), s_2)

    H = hidden
    # tanh(x) == 2*sigmoid(2x) - 1: scale the g-gate rows/bias by 2 (exact in
    # f32) so the kernel avoids the per-step gate tanh.
    gate_scale = jnp.ones((4 * H,), jnp.float32).at[2 * H:3 * H].set(2.0)
    wih_t = (w_ih * gate_scale[:, None]).T          # [D, 4H]
    whh_t = (w_hh * gate_scale[:, None]).T          # [H, 4H]
    b_lstm = (b_ih + b_hh) * gate_scale             # [4H]

    # Pack the small row vectors into one lane-padded [1, P] array (one DMA).
    raw = jnp.concatenate([b_lstm, b1, w2[0]])      # [4H + 2*NW]
    P = int(np.ceil(raw.shape[0] / 128) * 128)
    packed = jnp.zeros((1, P), jnp.float32).at[0, :raw.shape[0]].set(raw)

    params = dict(
        wih_t=wih_t,                                # [D, 4H]
        whh_t=whh_t,                                # [H, 4H]
        w1h_t=w1[:, :H].T,                          # [H, NW]
        w1a_t=w1[:, H:].T,                          # [A, NW]
        packed=packed,                              # [1, P]
        b2=b2,                                      # [1]  (SMEM scalar)
    )
    torch_like = dict(w_ih=w_ih, w_hh=w_hh, b_ih=b_ih, b_hh=b_hh,
                      w1=w1, b1=b1, w2=w2, b2=b2)
    return params, torch_like


def reference_forward(state_seq, action, p):
    """Pure-JAX reference mirroring the PyTorch module semantics (unscaled)."""
    B, T, D = state_seq.shape
    H = p["w_hh"].shape[1]
    h = jnp.zeros((B, H), jnp.float32)
    c = jnp.zeros((B, H), jnp.float32)
    for t in range(T):
        gates = (state_seq[:, t, :] @ p["w_ih"].T + h @ p["w_hh"].T
                 + p["b_ih"] + p["b_hh"])
        i_g = jax.nn.sigmoid(gates[:, 0 * H:1 * H])
        f_g = jax.nn.sigmoid(gates[:, 1 * H:2 * H])
        g_g = jnp.tanh(gates[:, 2 * H:3 * H])
        o_g = jax.nn.sigmoid(gates[:, 3 * H:4 * H])
        c = f_g * c + i_g * g_g
        h = o_g * jnp.tanh(c)
    x = jnp.concatenate([h, action], axis=1)
    x = jax.nn.relu(x @ p["w1"].T + p["b1"])
    x = x @ p["w2"].T + p["b2"]
    return x[:, 0]


if __name__ == "__main__":
    batch, seq_len, state_dim = 16, 8, 16         # B=16 exercises 2 batch tiles
    hidden, action_dim, net_width = 32, 7, 256

    key = jax.random.PRNGKey(0)
    k_p, k_x, k_a = jax.random.split(key, 3)
    params, torch_like = make_params(k_p, state_dim, hidden, action_dim, net_width)

    state_seq = jax.random.normal(k_x, (batch, seq_len, state_dim), jnp.float32)
    action = jax.random.normal(k_a, (batch, action_dim), jnp.float32)

    out = q_critic_forward(state_seq, action, params)
    out = jax.block_until_ready(out)

    ref = reference_forward(state_seq, action, torch_like)
    np.testing.assert_allclose(np.asarray(out), np.asarray(ref),
                               rtol=2e-4, atol=1e-4)
    assert out.shape == (batch,)

    print("KERNEL_OK")
</pallas_src>

<mosaic_0001>
module attributes {stable_mosaic.version = 11 : i64} {
  func.func @q_critic_kernel(%arg0: i32, %arg1: memref<8x8x16xf32, #tpu.memory_space<vmem>>, %arg2: memref<8x7xf32, #tpu.memory_space<vmem>>, %arg3: memref<16x128xf32, #tpu.memory_space<vmem>>, %arg4: memref<32x128xf32, #tpu.memory_space<vmem>>, %arg5: memref<32x256xf32, #tpu.memory_space<vmem>>, %arg6: memref<7x256xf32, #tpu.memory_space<vmem>>, %arg7: memref<1x640xf32, #tpu.memory_space<vmem>>, %arg8: memref<1xf32, #tpu.memory_space<smem>>, %arg9: memref<1x1x8xf32, #tpu.memory_space<vmem>>) attributes {dimension_semantics = [#tpu.dimension_semantics<parallel>], iteration_bounds = array<i64: 2>, scalar_prefetch = 0 : i64, scratch_operands = 0 : i64, tpu.core_type = #tpu.core_type<tc>, window_params = [{transform_indices = @transform_0, window_bounds = array<i64: 8, 8, 16>}, {transform_indices = @transform_1, window_bounds = array<i64: 8, 7>}, {pipeline_mode = #tpu.pipeline_mode<synchronous>, transform_indices = @transform_2, window_bounds = array<i64: 16, 128>}, {pipeline_mode = #tpu.pipeline_mode<synchronous>, transform_indices = @transform_3, window_bounds = array<i64: 32, 128>}, {pipeline_mode = #tpu.pipeline_mode<synchronous>, transform_indices = @transform_4, window_bounds = array<i64: 32, 256>}, {pipeline_mode = #tpu.pipeline_mode<synchronous>, transform_indices = @transform_5, window_bounds = array<i64: 7, 256>}, {pipeline_mode = #tpu.pipeline_mode<synchronous>, transform_indices = @transform_6, window_bounds = array<i64: 1, 640>}, {transform_indices = @transform_7, window_bounds = array<i64: 1>}, {transform_indices = @transform_8, window_bounds = array<i64: 1, 1, 8>}]} {
    %c0 = arith.constant 0 : index
    %c0_0 = arith.constant 0 : index
    %0 = vector.load %arg7[%c0, %c0_0] : memref<1x640xf32, #tpu.memory_space<vmem>>, vector<1x128xf32>
    %c0_1 = arith.constant 0 : index
    %c128 = arith.constant 128 : index
    %1 = vector.load %arg7[%c0_1, %c128] : memref<1x640xf32, #tpu.memory_space<vmem>>, vector<1x256xf32>
    %c0_2 = arith.constant 0 : index
    %c384 = arith.constant 384 : index
    %2 = vector.load %arg7[%c0_2, %c384] : memref<1x640xf32, #tpu.memory_space<vmem>>, vector<1x256xf32>
    %c0_3 = arith.constant 0 : index
    %c0_4 = arith.constant 0 : index
    %c0_5 = arith.constant 0 : index
    %3 = vector.load %arg1[%c0_3, %c0_4, %c0_5] : memref<8x8x16xf32, #tpu.memory_space<vmem>>, vector<8x8x16xf32>
    %4 = vector.shape_cast %3 : vector<8x8x16xf32> to vector<64x16xf32>
    %c0_6 = arith.constant 0 : index
    %c0_7 = arith.constant 0 : index
    %5 = vector.load %arg3[%c0_6, %c0_7] : memref<16x128xf32, #tpu.memory_space<vmem>>, vector<16x128xf32>
    %cst = arith.constant dense<0.000000e+00> : vector<64x128xf32>
    %6 = tpu.matmul %4, %5, %cst {dimension_numbers = #tpu.dot_dimension_numbers<[1], [0], [0], [1], [0, 0, 1, 1], [], []>} : vector<64x16xf32>, vector<16x128xf32>, vector<64x128xf32> -> vector<64x128xf32>
    %7 = vector.broadcast %0 : vector<1x128xf32> to vector<64x128xf32>
    %8 = arith.addf %6, %7 : vector<64x128xf32>
    %9 = vector.shape_cast %8 : vector<64x128xf32> to vector<8x8x128xf32>
    %c0_8 = arith.constant 0 : index
    %c0_9 = arith.constant 0 : index
    %10 = vector.load %arg2[%c0_8, %c0_9] : memref<8x7xf32, #tpu.memory_space<vmem>>, vector<8x7xf32>
    %c0_10 = arith.constant 0 : index
    %c0_11 = arith.constant 0 : index
    %11 = vector.load %arg6[%c0_10, %c0_11] : memref<7x256xf32, #tpu.memory_space<vmem>>, vector<7x256xf32>
    %cst_12 = arith.constant dense<0.000000e+00> : vector<8x256xf32>
    %12 = tpu.matmul %10, %11, %cst_12 {dimension_numbers = #tpu.dot_dimension_numbers<[1], [0], [0], [1], [0, 0, 1, 1], [], []>} : vector<8x7xf32>, vector<7x256xf32>, vector<8x256xf32> -> vector<8x256xf32>
    %13 = vector.broadcast %1 : vector<1x256xf32> to vector<8x256xf32>
    %14 = arith.addf %12, %13 : vector<8x256xf32>
    %c0_13 = arith.constant 0 : index
    %c0_14 = arith.constant 0 : index
    %15 = vector.load %arg4[%c0_13, %c0_14] : memref<32x128xf32, #tpu.memory_space<vmem>>, vector<32x128xf32>
    %cst_15 = arith.constant 0.000000e+00 : f32
    %16 = vector.broadcast %cst_15 : f32 to vector<8x32xf32>
    %cst_16 = arith.constant 0.000000e+00 : f32
    %17 = vector.broadcast %cst_16 : f32 to vector<8x32xf32>
    %18 = vector.extract_strided_slice %9 {offsets = [0, 0, 0], sizes = [1, 8, 128], strides = [1, 1, 1]} : vector<8x8x128xf32> to vector<1x8x128xf32>
    %19 = vector.shape_cast %18 : vector<1x8x128xf32> to vector<8x128xf32>
    %cst_17 = arith.constant dense<0.000000e+00> : vector<8x128xf32>
    %20 = tpu.matmul %16, %15, %cst_17 {dimension_numbers = #tpu.dot_dimension_numbers<[1], [0], [0], [1], [0, 0, 1, 1], [], []>} : vector<8x32xf32>, vector<32x128xf32>, vector<8x128xf32> -> vector<8x128xf32>
    %21 = arith.addf %19, %20 : vector<8x128xf32>
    %22 = arith.negf %21 : vector<8x128xf32>
    %23 = math.exp %22 : vector<8x128xf32>
    %cst_18 = arith.constant 1.000000e+00 : f32
    %24 = vector.broadcast %cst_18 : f32 to vector<8x128xf32>
    %25 = arith.addf %24, %23 : vector<8x128xf32>
    %26 = arith.divf %24, %25 : vector<8x128xf32>
    %27 = vector.extract_strided_slice %26 {offsets = [0, 0], sizes = [8, 32], strides = [1, 1]} : vector<8x128xf32> to vector<8x32xf32>
    %28 = vector.extract_strided_slice %26 {offsets = [0, 32], sizes = [8, 32], strides = [1, 1]} : vector<8x128xf32> to vector<8x32xf32>
    %29 = vector.extract_strided_slice %26 {offsets = [0, 64], sizes = [8, 32], strides = [1, 1]} : vector<8x128xf32> to vector<8x32xf32>
    %cst_19 = arith.constant 2.000000e+00 : f32
    %30 = vector.broadcast %cst_19 : f32 to vector<8x32xf32>
    %31 = arith.mulf %30, %29 : vector<8x32xf32>
    %cst_20 = arith.constant 1.000000e+00 : f32
    %32 = vector.broadcast %cst_20 : f32 to vector<8x32xf32>
    %33 = arith.subf %31, %32 : vector<8x32xf32>
    %34 = vector.extract_strided_slice %26 {offsets = [0, 96], sizes = [8, 32], strides = [1, 1]} : vector<8x128xf32> to vector<8x32xf32>
    %35 = arith.mulf %28, %17 : vector<8x32xf32>
    %36 = arith.mulf %27, %33 : vector<8x32xf32>
    %37 = arith.addf %35, %36 : vector<8x32xf32>
    %38 = math.tanh %37 : vector<8x32xf32>
    %39 = arith.mulf %34, %38 : vector<8x32xf32>
    %40 = vector.extract_strided_slice %9 {offsets = [1, 0, 0], sizes = [1, 8, 128], strides = [1, 1, 1]} : vector<8x8x128xf32> to vector<1x8x128xf32>
    %41 = vector.shape_cast %40 : vector<1x8x128xf32> to vector<8x128xf32>
    %cst_21 = arith.constant dense<0.000000e+00> : vector<8x128xf32>
    %42 = tpu.matmul %39, %15, %cst_21 {dimension_numbers = #tpu.dot_dimension_numbers<[1], [0], [0], [1], [0, 0, 1, 1], [], []>} : vector<8x32xf32>, vector<32x128xf32>, vector<8x128xf32> -> vector<8x128xf32>
    %43 = arith.addf %41, %42 : vector<8x128xf32>
    %44 = arith.negf %43 : vector<8x128xf32>
    %45 = math.exp %44 : vector<8x128xf32>
    %cst_22 = arith.constant 1.000000e+00 : f32
    %46 = vector.broadcast %cst_22 : f32 to vector<8x128xf32>
    %47 = arith.addf %46, %45 : vector<8x128xf32>
    %48 = arith.divf %46, %47 : vector<8x128xf32>
    %49 = vector.extract_strided_slice %48 {offsets = [0, 0], sizes = [8, 32], strides = [1, 1]} : vector<8x128xf32> to vector<8x32xf32>
    %50 = vector.extract_strided_slice %48 {offsets = [0, 32], sizes = [8, 32], strides = [1, 1]} : vector<8x128xf32> to vector<8x32xf32>
    %51 = vector.extract_strided_slice %48 {offsets = [0, 64], sizes = [8, 32], strides = [1, 1]} : vector<8x128xf32> to vector<8x32xf32>
    %cst_23 = arith.constant 2.000000e+00 : f32
    %52 = vector.broadcast %cst_23 : f32 to vector<8x32xf32>
    %53 = arith.mulf %52, %51 : vector<8x32xf32>
    %cst_24 = arith.constant 1.000000e+00 : f32
    %54 = vector.broadcast %cst_24 : f32 to vector<8x32xf32>
    %55 = arith.subf %53, %54 : vector<8x32xf32>
    %56 = vector.extract_strided_slice %48 {offsets = [0, 96], sizes = [8, 32], strides = [1, 1]} : vector<8x128xf32> to vector<8x32xf32>
    %57 = arith.mulf %50, %37 : vector<8x32xf32>
    %58 = arith.mulf %49, %55 : vector<8x32xf32>
    %59 = arith.addf %57, %58 : vector<8x32xf32>
    %60 = math.tanh %59 : vector<8x32xf32>
    %61 = arith.mulf %56, %60 : vector<8x32xf32>
    %62 = vector.extract_strided_slice %9 {offsets = [2, 0, 0], sizes = [1, 8, 128], strides = [1, 1, 1]} : vector<8x8x128xf32> to vector<1x8x128xf32>
    %63 = vector.shape_cast %62 : vector<1x8x128xf32> to vector<8x128xf32>
    %cst_25 = arith.constant dense<0.000000e+00> : vector<8x128xf32>
    %64 = tpu.matmul %61, %15, %cst_25 {dimension_numbers = #tpu.dot_dimension_numbers<[1], [0], [0], [1], [0, 0, 1, 1], [], []>} : vector<8x32xf32>, vector<32x128xf32>, vector<8x128xf32> -> vector<8x128xf32>
    %65 = arith.addf %63, %64 : vector<8x128xf32>
    %66 = arith.negf %65 : vector<8x128xf32>
    %67 = math.exp %66 : vector<8x128xf32>
    %cst_26 = arith.constant 1.000000e+00 : f32
    %68 = vector.broadcast %cst_26 : f32 to vector<8x128xf32>
    %69 = arith.addf %68, %67 : vector<8x128xf32>
    %70 = arith.divf %68, %69 : vector<8x128xf32>
    %71 = vector.extract_strided_slice %70 {offsets = [0, 0], sizes = [8, 32], strides = [1, 1]} : vector<8x128xf32> to vector<8x32xf32>
    %72 = vector.extract_strided_slice %70 {offsets = [0, 32], sizes = [8, 32], strides = [1, 1]} : vector<8x128xf32> to vector<8x32xf32>
    %73 = vector.extract_strided_slice %70 {offsets = [0, 64], sizes = [8, 32], strides = [1, 1]} : vector<8x128xf32> to vector<8x32xf32>
    %cst_27 = arith.constant 2.000000e+00 : f32
    %74 = vector.broadcast %cst_27 : f32 to vector<8x32xf32>
    %75 = arith.mulf %74, %73 : vector<8x32xf32>
    %cst_28 = arith.constant 1.000000e+00 : f32
    %76 = vector.broadcast %cst_28 : f32 to vector<8x32xf32>
    %77 = arith.subf %75, %76 : vector<8x32xf32>
    %78 = vector.extract_strided_slice %70 {offsets = [0, 96], sizes = [8, 32], strides = [1, 1]} : vector<8x128xf32> to vector<8x32xf32>
    %79 = arith.mulf %72, %59 : vector<8x32xf32>
    %80 = arith.mulf %71, %77 : vector<8x32xf32>
    %81 = arith.addf %79, %80 : vector<8x32xf32>
    %82 = math.tanh %81 : vector<8x32xf32>
    %83 = arith.mulf %78, %82 : vector<8x32xf32>
    %84 = vector.extract_strided_slice %9 {offsets = [3, 0, 0], sizes = [1, 8, 128], strides = [1, 1, 1]} : vector<8x8x128xf32> to vector<1x8x128xf32>
    %85 = vector.shape_cast %84 : vector<1x8x128xf32> to vector<8x128xf32>
    %cst_29 = arith.constant dense<0.000000e+00> : vector<8x128xf32>
    %86 = tpu.matmul %83, %15, %cst_29 {dimension_numbers = #tpu.dot_dimension_numbers<[1], [0], [0], [1], [0, 0, 1, 1], [], []>} : vector<8x32xf32>, vector<32x128xf32>, vector<8x128xf32> -> vector<8x128xf32>
    %87 = arith.addf %85, %86 : vector<8x128xf32>
    %88 = arith.negf %87 : vector<8x128xf32>
    %89 = math.exp %88 : vector<8x128xf32>
    %cst_30 = arith.constant 1.000000e+00 : f32
    %90 = vector.broadcast %cst_30 : f32 to vector<8x128xf32>
    %91 = arith.addf %90, %89 : vector<8x128xf32>
    %92 = arith.divf %90, %91 : vector<8x128xf32>
    %93 = vector.extract_strided_slice %92 {offsets = [0, 0], sizes = [8, 32], strides = [1, 1]} : vector<8x128xf32> to vector<8x32xf32>
    %94 = vector.extract_strided_slice %92 {offsets = [0, 32], sizes = [8, 32], strides = [1, 1]} : vector<8x128xf32> to vector<8x32xf32>
    %95 = vector.extract_strided_slice %92 {offsets = [0, 64], sizes = [8, 32], strides = [1, 1]} : vector<8x128xf32> to vector<8x32xf32>
    %cst_31 = arith.constant 2.000000e+00 : f32
    %96 = vector.broadcast %cst_31 : f32 to vector<8x32xf32>
    %97 = arith.mulf %96, %95 : vector<8x32xf32>
    %cst_32 = arith.constant 1.000000e+00 : f32
    %98 = vector.broadcast %cst_32 : f32 to vector<8x32xf32>
    %99 = arith.subf %97, %98 : vector<8x32xf32>
    %100 = vector.extract_strided_slice %92 {offsets = [0, 96], sizes = [8, 32], strides = [1, 1]} : vector<8x128xf32> to vector<8x32xf32>
    %101 = arith.mulf %94, %81 : vector<8x32xf32>
    %102 = arith.mulf %93, %99 : vector<8x32xf32>
    %103 = arith.addf %101, %102 : vector<8x32xf32>
    %104 = math.tanh %103 : vector<8x32xf32>
    %105 = arith.mulf %100, %104 : vector<8x32xf32>
    %106 = vector.extract_strided_slice %9 {offsets = [4, 0, 0], sizes = [1, 8, 128], strides = [1, 1, 1]} : vector<8x8x128xf32> to vector<1x8x128xf32>
    %107 = vector.shape_cast %106 : vector<1x8x128xf32> to vector<8x128xf32>
    %cst_33 = arith.constant dense<0.000000e+00> : vector<8x128xf32>
    %108 = tpu.matmul %105, %15, %cst_33 {dimension_numbers = #tpu.dot_dimension_numbers<[1], [0], [0], [1], [0, 0, 1, 1], [], []>} : vector<8x32xf32>, vector<32x128xf32>, vector<8x128xf32> -> vector<8x128xf32>
    %109 = arith.addf %107, %108 : vector<8x128xf32>
    %110 = arith.negf %109 : vector<8x128xf32>
    %111 = math.exp %110 : vector<8x128xf32>
    %cst_34 = arith.constant 1.000000e+00 : f32
    %112 = vector.broadcast %cst_34 : f32 to vector<8x128xf32>
    %113 = arith.addf %112, %111 : vector<8x128xf32>
    %114 = arith.divf %112, %113 : vector<8x128xf32>
    %115 = vector.extract_strided_slice %114 {offsets = [0, 0], sizes = [8, 32], strides = [1, 1]} : vector<8x128xf32> to vector<8x32xf32>
    %116 = vector.extract_strided_slice %114 {offsets = [0, 32], sizes = [8, 32], strides = [1, 1]} : vector<8x128xf32> to vector<8x32xf32>
    %117 = vector.extract_strided_slice %114 {offsets = [0, 64], sizes = [8, 32], strides = [1, 1]} : vector<8x128xf32> to vector<8x32xf32>
    %cst_35 = arith.constant 2.000000e+00 : f32
    %118 = vector.broadcast %cst_35 : f32 to vector<8x32xf32>
    %119 = arith.mulf %118, %117 : vector<8x32xf32>
    %cst_36 = arith.constant 1.000000e+00 : f32
    %120 = vector.broadcast %cst_36 : f32 to vector<8x32xf32>
    %121 = arith.subf %119, %120 : vector<8x32xf32>
    %122 = vector.extract_strided_slice %114 {offsets = [0, 96], sizes = [8, 32], strides = [1, 1]} : vector<8x128xf32> to vector<8x32xf32>
    %123 = arith.mulf %116, %103 : vector<8x32xf32>
    %124 = arith.mulf %115, %121 : vector<8x32xf32>
    %125 = arith.addf %123, %124 : vector<8x32xf32>
    %126 = math.tanh %125 : vector<8x32xf32>
    %127 = arith.mulf %122, %126 : vector<8x32xf32>
    %128 = vector.extract_strided_slice %9 {offsets = [5, 0, 0], sizes = [1, 8, 128], strides = [1, 1, 1]} : vector<8x8x128xf32> to vector<1x8x128xf32>
    %129 = vector.shape_cast %128 : vector<1x8x128xf32> to vector<8x128xf32>
    %cst_37 = arith.constant dense<0.000000e+00> : vector<8x128xf32>
    %130 = tpu.matmul %127, %15, %cst_37 {dimension_numbers = #tpu.dot_dimension_numbers<[1], [0], [0], [1], [0, 0, 1, 1], [], []>} : vector<8x32xf32>, vector<32x128xf32>, vector<8x128xf32> -> vector<8x128xf32>
    %131 = arith.addf %129, %130 : vector<8x128xf32>
    %132 = arith.negf %131 : vector<8x128xf32>
    %133 = math.exp %132 : vector<8x128xf32>
    %cst_38 = arith.constant 1.000000e+00 : f32
    %134 = vector.broadcast %cst_38 : f32 to vector<8x128xf32>
    %135 = arith.addf %134, %133 : vector<8x128xf32>
    %136 = arith.divf %134, %135 : vector<8x128xf32>
    %137 = vector.extract_strided_slice %136 {offsets = [0, 0], sizes = [8, 32], strides = [1, 1]} : vector<8x128xf32> to vector<8x32xf32>
    %138 = vector.extract_strided_slice %136 {offsets = [0, 32], sizes = [8, 32], strides = [1, 1]} : vector<8x128xf32> to vector<8x32xf32>
    %139 = vector.extract_strided_slice %136 {offsets = [0, 64], sizes = [8, 32], strides = [1, 1]} : vector<8x128xf32> to vector<8x32xf32>
    %cst_39 = arith.constant 2.000000e+00 : f32
    %140 = vector.broadcast %cst_39 : f32 to vector<8x32xf32>
    %141 = arith.mulf %140, %139 : vector<8x32xf32>
    %cst_40 = arith.constant 1.000000e+00 : f32
    %142 = vector.broadcast %cst_40 : f32 to vector<8x32xf32>
    %143 = arith.subf %141, %142 : vector<8x32xf32>
    %144 = vector.extract_strided_slice %136 {offsets = [0, 96], sizes = [8, 32], strides = [1, 1]} : vector<8x128xf32> to vector<8x32xf32>
    %145 = arith.mulf %138, %125 : vector<8x32xf32>
    %146 = arith.mulf %137, %143 : vector<8x32xf32>
    %147 = arith.addf %145, %146 : vector<8x32xf32>
    %148 = math.tanh %147 : vector<8x32xf32>
    %149 = arith.mulf %144, %148 : vector<8x32xf32>
    %150 = vector.extract_strided_slice %9 {offsets = [6, 0, 0], sizes = [1, 8, 128], strides = [1, 1, 1]} : vector<8x8x128xf32> to vector<1x8x128xf32>
    %151 = vector.shape_cast %150 : vector<1x8x128xf32> to vector<8x128xf32>
    %cst_41 = arith.constant dense<0.000000e+00> : vector<8x128xf32>
    %152 = tpu.matmul %149, %15, %cst_41 {dimension_numbers = #tpu.dot_dimension_numbers<[1], [0], [0], [1], [0, 0, 1, 1], [], []>} : vector<8x32xf32>, vector<32x128xf32>, vector<8x128xf32> -> vector<8x128xf32>
    %153 = arith.addf %151, %152 : vector<8x128xf32>
    %154 = arith.negf %153 : vector<8x128xf32>
    %155 = math.exp %154 : vector<8x128xf32>
    %cst_42 = arith.constant 1.000000e+00 : f32
    %156 = vector.broadcast %cst_42 : f32 to vector<8x128xf32>
    %157 = arith.addf %156, %155 : vector<8x128xf32>
    %158 = arith.divf %156, %157 : vector<8x128xf32>
    %159 = vector.extract_strided_slice %158 {offsets = [0, 0], sizes = [8, 32], strides = [1, 1]} : vector<8x128xf32> to vector<8x32xf32>
    %160 = vector.extract_strided_slice %158 {offsets = [0, 32], sizes = [8, 32], strides = [1, 1]} : vector<8x128xf32> to vector<8x32xf32>
    %161 = vector.extract_strided_slice %158 {offsets = [0, 64], sizes = [8, 32], strides = [1, 1]} : vector<8x128xf32> to vector<8x32xf32>
    %cst_43 = arith.constant 2.000000e+00 : f32
    %162 = vector.broadcast %cst_43 : f32 to vector<8x32xf32>
    %163 = arith.mulf %162, %161 : vector<8x32xf32>
    %cst_44 = arith.constant 1.000000e+00 : f32
    %164 = vector.broadcast %cst_44 : f32 to vector<8x32xf32>
    %165 = arith.subf %163, %164 : vector<8x32xf32>
    %166 = vector.extract_strided_slice %158 {offsets = [0, 96], sizes = [8, 32], strides = [1, 1]} : vector<8x128xf32> to vector<8x32xf32>
    %167 = arith.mulf %160, %147 : vector<8x32xf32>
    %168 = arith.mulf %159, %165 : vector<8x32xf32>
    %169 = arith.addf %167, %168 : vector<8x32xf32>
    %170 = math.tanh %169 : vector<8x32xf32>
    %171 = arith.mulf %166, %170 : vector<8x32xf32>
    %172 = vector.extract_strided_slice %9 {offsets = [7, 0, 0], sizes = [1, 8, 128], strides = [1, 1, 1]} : vector<8x8x128xf32> to vector<1x8x128xf32>
    %173 = vector.shape_cast %172 : vector<1x8x128xf32> to vector<8x128xf32>
    %cst_45 = arith.constant dense<0.000000e+00> : vector<8x128xf32>
    %174 = tpu.matmul %171, %15, %cst_45 {dimension_numbers = #tpu.dot_dimension_numbers<[1], [0], [0], [1], [0, 0, 1, 1], [], []>} : vector<8x32xf32>, vector<32x128xf32>, vector<8x128xf32> -> vector<8x128xf32>
    %175 = arith.addf %173, %174 : vector<8x128xf32>
    %176 = arith.negf %175 : vector<8x128xf32>
    %177 = math.exp %176 : vector<8x128xf32>
    %cst_46 = arith.constant 1.000000e+00 : f32
    %178 = vector.broadcast %cst_46 : f32 to vector<8x128xf32>
    %179 = arith.addf %178, %177 : vector<8x128xf32>
    %180 = arith.divf %178, %179 : vector<8x128xf32>
    %181 = vector.extract_strided_slice %180 {offsets = [0, 0], sizes = [8, 32], strides = [1, 1]} : vector<8x128xf32> to vector<8x32xf32>
    %182 = vector.extract_strided_slice %180 {offsets = [0, 32], sizes = [8, 32], strides = [1, 1]} : vector<8x128xf32> to vector<8x32xf32>
    %183 = vector.extract_strided_slice %180 {offsets = [0, 64], sizes = [8, 32], strides = [1, 1]} : vector<8x128xf32> to vector<8x32xf32>
    %cst_47 = arith.constant 2.000000e+00 : f32
    %184 = vector.broadcast %cst_47 : f32 to vector<8x32xf32>
    %185 = arith.mulf %184, %183 : vector<8x32xf32>
    %cst_48 = arith.constant 1.000000e+00 : f32
    %186 = vector.broadcast %cst_48 : f32 to vector<8x32xf32>
    %187 = arith.subf %185, %186 : vector<8x32xf32>
    %188 = vector.extract_strided_slice %180 {offsets = [0, 96], sizes = [8, 32], strides = [1, 1]} : vector<8x128xf32> to vector<8x32xf32>
    %189 = arith.mulf %182, %169 : vector<8x32xf32>
    %190 = arith.mulf %181, %187 : vector<8x32xf32>
    %191 = arith.addf %189, %190 : vector<8x32xf32>
    %192 = math.tanh %191 : vector<8x32xf32>
    %193 = arith.mulf %188, %192 : vector<8x32xf32>
    %c0_49 = arith.constant 0 : index
    %c0_50 = arith.constant 0 : index
    %194 = vector.load %arg5[%c0_49, %c0_50] : memref<32x256xf32, #tpu.memory_space<vmem>>, vector<32x256xf32>
    %cst_51 = arith.constant dense<0.000000e+00> : vector<8x256xf32>
    %195 = tpu.matmul %193, %194, %cst_51 {dimension_numbers = #tpu.dot_dimension_numbers<[1], [0], [0], [1], [0, 0, 1, 1], [], []>} : vector<8x32xf32>, vector<32x256xf32>, vector<8x256xf32> -> vector<8x256xf32>
    %196 = arith.addf %195, %14 : vector<8x256xf32>
    %cst_52 = arith.constant 0.000000e+00 : f32
    %197 = vector.broadcast %cst_52 : f32 to vector<8x256xf32>
    %198 = arith.maximumf %196, %197 : vector<8x256xf32>
    %199 = vector.broadcast %2 : vector<1x256xf32> to vector<8x256xf32>
    %200 = arith.mulf %198, %199 : vector<8x256xf32>
    %cst_53 = arith.constant dense<0.000000e+00> : vector<8xf32>
    %201 = vector.multi_reduction <add>, %200, %cst_53 [1] : vector<8x256xf32> to vector<8xf32>
    %c0_54 = arith.constant 0 : index
    %202 = memref.load %arg8[%c0_54] : memref<1xf32, #tpu.memory_space<smem>>
    %203 = vector.broadcast %202 : f32 to vector<8xf32>
    %204 = arith.addf %201, %203 : vector<8xf32>
    %205 = vector.shape_cast %204 : vector<8xf32> to vector<1x1x8xf32>
    %c0_55 = arith.constant 0 : index
    %c0_56 = arith.constant 0 : index
    %c0_57 = arith.constant 0 : index
    %206 = vector.load %arg9[%c0_55, %c0_56, %c0_57] : memref<1x1x8xf32, #tpu.memory_space<vmem>>, vector<1x1x8xf32>
    tpu.vector_store %arg9[%c0_55, %c0_56, %c0_57], %205 {strides = array<i32>} : memref<1x1x8xf32, #tpu.memory_space<vmem>>, vector<1x1x8xf32>,
    return
  }
  func.func @transform_0(%arg0: i32) -> (i32, i32, i32) {
    %c0_i32 = arith.constant 0 : i32
    %c0_i32_0 = arith.constant 0 : i32
    %c0_i32_1 = arith.constant 0 : i32
    return %c0_i32, %arg0, %c0_i32_0 : i32, i32, i32
  }
  func.func @transform_1(%arg0: i32) -> (i32, i32) {
    %c0_i32 = arith.constant 0 : i32
    %c0_i32_0 = arith.constant 0 : i32
    return %arg0, %c0_i32 : i32, i32
  }
  func.func @transform_2(%arg0: i32) -> (i32, i32) {
    %c0_i32 = arith.constant 0 : i32
    %c0_i32_0 = arith.constant 0 : i32
    %c0_i32_1 = arith.constant 0 : i32
    return %c0_i32, %c0_i32_0 : i32, i32
  }
  func.func @transform_3(%arg0: i32) -> (i32, i32) {
    %c0_i32 = arith.constant 0 : i32
    %c0_i32_0 = arith.constant 0 : i32
    %c0_i32_1 = arith.constant 0 : i32
    return %c0_i32, %c0_i32_0 : i32, i32
  }
  func.func @transform_4(%arg0: i32) -> (i32, i32) {
    %c0_i32 = arith.constant 0 : i32
    %c0_i32_0 = arith.constant 0 : i32
    %c0_i32_1 = arith.constant 0 : i32
    return %c0_i32, %c0_i32_0 : i32, i32
  }
  func.func @transform_5(%arg0: i32) -> (i32, i32) {
    %c0_i32 = arith.constant 0 : i32
    %c0_i32_0 = arith.constant 0 : i32
    %c0_i32_1 = arith.constant 0 : i32
    return %c0_i32, %c0_i32_0 : i32, i32
  }
  func.func @transform_6(%arg0: i32) -> (i32, i32) {
    %c0_i32 = arith.constant 0 : i32
    %c0_i32_0 = arith.constant 0 : i32
    %c0_i32_1 = arith.constant 0 : i32
    return %c0_i32, %c0_i32_0 : i32, i32
  }
  func.func @transform_7(%arg0: i32) -> i32 {
    %c0_i32 = arith.constant 0 : i32
    %c0_i32_0 = arith.constant 0 : i32
    return %c0_i32 : i32
  }
  func.func @transform_8(%arg0: i32) -> (i32, i32, i32) {
    %c0_i32 = arith.constant 0 : i32
    %c0_i32_0 = arith.constant 0 : i32
    %c0_i32_1 = arith.constant 0 : i32
    return %arg0, %c0_i32, %c0_i32_0 : i32, i32, i32
  }
}

</mosaic_0001>

<llo_original>
// kernel: tpu_custom_call.1
$region0: #{tpu_custom_call.1}
  #allocation0 [shape = 'u32[]', space=smem, size = 0x4, offset = 0x4, fixed_abs, tag = 'smem constant byte address 0x4 - core index']
  #allocation1 [shape = 'u32[144,128]{1,0:T(1,128)}', space=vmem, size = 0x12000, scoped, tag = 'internal scratch']
  #allocation2 [shape = 'f32[1]{0:T(128)S(6)}', space=smem, size = 0x200, scoped, tag = 'scoped memory for tpu_custom_call.1']
  %s0 = inlined_call_operand.hbm [shape: f32[8,16,16], index: 0, kind: input, shape index: {}]
  %s1 = inlined_call_operand.vmem [shape: f32[16,7], index: 1, kind: input, shape index: {}]
  %s2 = inlined_call_operand.hbm [shape: f32[16,128], index: 2, kind: input, shape index: {}]
  %s3 = inlined_call_operand.vmem [shape: f32[32,128], index: 3, kind: input, shape index: {}]
  %s4 = inlined_call_operand.hbm [shape: f32[32,256], index: 4, kind: input, shape index: {}]
  %s5 = inlined_call_operand.hbm [shape: f32[7,256], index: 5, kind: input, shape index: {}]
  %s6 = inlined_call_operand.vmem [shape: f32[1,640], index: 6, kind: input, shape index: {}]
  %s7 = inlined_call_operand.<no memory space> [shape: f32[1], index: 7, kind: input, shape index: {}]
  %s8 = inlined_call_operand.hbm [shape: f32[2,1,8], index: 8, kind: output, shape index: {}]
  %s9 = sld [smem:[#allocation0]]
  $region81: #{tpu_custom_call.1} parent=0
    _
  %s11 = ssub.s32 1, %s9
  %s12 = scalar_select 0, %s11, %s9
  %13 = sst [smem:[#allocation2]] %s7
  $region1: #{tpu_custom_call.1} parent=0
    #allocation3 [shape = 'u8[65536]{0}', space=vmem, size = 0x10000, scoped, tag = 'input window, operand 0']
    #allocation4 [shape = 's32[2]{0}', space=sflag, size = 0x8, scoped, tag = 'scoped memory for tpu_custom_call.1']
    #allocation5 [shape = 's32[2]{0}', space=sflag, size = 0x8, scoped, tag = 'scoped memory for tpu_custom_call.1']
    #allocation6 [shape = 'u8[8192]{0}', space=vmem, size = 0x2000, scoped, tag = 'input window, operand 2, single buffered']
    #allocation7 [shape = 's32[1]{0}', space=sflag, size = 0x4, scoped, tag = 'scoped memory for tpu_custom_call.1']
    #allocation8 [shape = 'u8[32768]{0}', space=vmem, size = 0x8000, scoped, tag = 'input window, operand 4, single buffered']
    #allocation9 [shape = 'u8[8192]{0}', space=vmem, size = 0x2000, scoped, tag = 'input window, operand 5, single buffered']
    #allocation10 [shape = 's32[1]{0}', space=sflag, size = 0x4, scoped, tag = 'scoped memory for tpu_custom_call.1']
    #allocation11 [shape = 'u8[1024]{0}', space=vmem, size = 0x400, scoped, tag = 'output window, operand 0']
    %14 = vsyncpa [#allocation4], 0
    %s15 = scalar_lea.sflag [#allocation4], 1
    %16 = vsyncpa %s15, 0
    %17 = vsyncpa [#allocation7], 0
    %18 = vsyncpa [#allocation10], 0
    %19 = vsyncpa [#allocation5], 0
    %s20 = scalar_lea.sflag [#allocation5], 1
    %21 = vsyncpa %s20, 0
    loop: start=0, step=1, limit=4
    $region2: #{tpu_custom_call.1} parent=1 // loop_pre_header
      _
    $region3: #{tpu_custom_call.1} parent=1 // loop_header
      %s23 = sphi 0, %s27
      %p24 = scmp.ge.s32.totalorder %s23, 4
      %s33 = sphi 0, %s35
      %s36 = sphi 0, %s33
      %s37 = sphi 0, %s36
      %s53 = sphi 0, %s37
      %s59 = sphi 0, %s61
      %s62 = sphi 0, %s59
      %s63 = sphi 0, %s62
      %s79 = sphi 0, %s63
      %s83 = sphi 0, %s83
      %s85 = sphi 0, %s83
      %s86 = sphi 0, %s85
      %s100 = sphi 0, %s86
      %s104 = sphi 0, %s104
      %s106 = sphi 0, %s104
      %s107 = sphi 0, %s106
      %s121 = sphi 0, %s107
      %s125 = sphi 0, %s125
      %s127 = sphi 0, %s125
      %s128 = sphi 0, %s127
      %s142 = sphi 0, %s128
      %s146 = sphi 0, %s146
      %s148 = sphi 0, %s146
      %s149 = sphi 0, %s148
      %s163 = sphi 0, %s149
      %s167 = sphi 0, %s167
      %s169 = sphi 0, %s167
      %s170 = sphi 0, %s169
      %s184 = sphi 0, %s170
      %s188 = sphi 0, %s188
      %s190 = sphi 0, %s188
      %s191 = sphi 0, %s190
      %s205 = sphi 0, %s191
      %s211 = sphi 0, %s213
      %s214 = sphi 0, %s211
      %s215 = sphi 0, %s214
      %s231 = sphi 0, %s215
    $region4: #{tpu_custom_call.1} parent=1 // loop_header_branch
      %26 = sbr.rel (%p24) target = $region8
    $region5: #{tpu_custom_call.1} parent=1 // loop_body
      %s28 = ssub.s32 %s23, 1
      %s29 = ssub.s32 %s23, 2
      %s30 = sadd.s32 %s23, 1
      %s31 = ssub.s32 %s23, %s30
      %p32 = scmp.eq.s32.totalorder %s31, 0
      %s34 = sadd.s32 %s33, 1
      %s35 = scalar_select %p32, %s33, %s34
      %p38 = pneg %p32
      %p39 = scmp.eq.s32.totalorder %s23, 1
      %p40 = por %p38, %p39
      %p41 = scmp.ne.s32.totalorder %s33, %s36
      %p42 = scmp.eq.s32.totalorder %s23, 0
      %p43 = por %p41, %p42
      %p44 = scmp.ne.s32.totalorder %s33, %s36
      %p45 = scmp.eq.s32.totalorder %s28, 1
      %p46 = por %p44, %p45
      %p47 = scmp.ne.s32.totalorder %s36, %s37
      %p48 = scmp.eq.s32.totalorder %s28, 0
      %p49 = por %p47, %p48
      %p50 = scmp.ne.s32.totalorder %s36, %s37
      %p51 = scmp.eq.s32.totalorder %s29, 1
      %p52 = por %p50, %p51
      %p54 = scmp.ne.s32.totalorder %s37, %s53
      %p55 = scmp.eq.s32.totalorder %s29, 0
      %p56 = por %p54, %p55
      %s57 = ssub.s32 %s23, %s30
      %p58 = scmp.eq.s32.totalorder %s57, 0
      %s60 = sadd.s32 %s59, 1
      %s61 = scalar_select %p58, %s59, %s60
      %p64 = pneg %p58
      %p65 = scmp.eq.s32.totalorder %s23, 1
      %p66 = por %p64, %p65
      %p67 = scmp.ne.s32.totalorder %s59, %s62
      %p68 = scmp.eq.s32.totalorder %s23, 0
      %p69 = por %p67, %p68
      %p70 = scmp.ne.s32.totalorder %s59, %s62
      %p71 = scmp.eq.s32.totalorder %s28, 1
      %p72 = por %p70, %p71
      %p73 = scmp.ne.s32.totalorder %s62, %s63
      %p74 = scmp.eq.s32.totalorder %s28, 0
      %p75 = por %p73, %p74
      %p76 = scmp.ne.s32.totalorder %s62, %s63
      %p77 = scmp.eq.s32.totalorder %s29, 1
      %p78 = por %p76, %p77
      %p80 = scmp.ne.s32.totalorder %s63, %s79
      %p81 = scmp.eq.s32.totalorder %s29, 0
      %p82 = por %p80, %p81
      %s84 = sadd.s32 %s83, 1
      %p87 = scmp.eq.s32.totalorder %s23, 1
      %p88 = scmp.ne.s32.totalorder %s83, %s85
      %p89 = scmp.eq.s32.totalorder %s23, 0
      %p90 = por %p88, %p89
      %p91 = scmp.ne.s32.totalorder %s83, %s85
      %p92 = scmp.eq.s32.totalorder %s28, 1
      %p93 = por %p91, %p92
      %p94 = scmp.ne.s32.totalorder %s85, %s86
      %p95 = scmp.eq.s32.totalorder %s28, 0
      %p96 = por %p94, %p95
      %p97 = scmp.ne.s32.totalorder %s85, %s86
      %p98 = scmp.eq.s32.totalorder %s29, 1
      %p99 = por %p97, %p98
      %p101 = scmp.ne.s32.totalorder %s86, %s100
      %p102 = scmp.eq.s32.totalorder %s29, 0
      %p103 = por %p101, %p102
      %s105 = sadd.s32 %s104, 1
      %p108 = scmp.eq.s32.totalorder %s23, 1
      %p109 = scmp.ne.s32.totalorder %s104, %s106
      %p110 = scmp.eq.s32.totalorder %s23, 0
      %p111 = por %p109, %p110
      %p112 = scmp.ne.s32.totalorder %s104, %s106
      %p113 = scmp.eq.s32.totalorder %s28, 1
      %p114 = por %p112, %p113
      %p115 = scmp.ne.s32.totalorder %s106, %s107
      %p116 = scmp.eq.s32.totalorder %s28, 0
      %p117 = por %p115, %p116
      %p118 = scmp.ne.s32.totalorder %s106, %s107
      %p119 = scmp.eq.s32.totalorder %s29, 1
      %p120 = por %p118, %p119
      %p122 = scmp.ne.s32.totalorder %s107, %s121
      %p123 = scmp.eq.s32.totalorder %s29, 0
      %p124 = por %p122, %p123
      %s126 = sadd.s32 %s125, 1
      %p129 = scmp.eq.s32.totalorder %s23, 1
      %p130 = scmp.ne.s32.totalorder %s125, %s127
      %p131 = scmp.eq.s32.totalorder %s23, 0
      %p132 = por %p130, %p131
      %p133 = scmp.ne.s32.totalorder %s125, %s127
      %p134 = scmp.eq.s32.totalorder %s28, 1
      %p135 = por %p133, %p134
      %p136 = scmp.ne.s32.totalorder %s127, %s128
      %p137 = scmp.eq.s32.totalorder %s28, 0
      %p138 = por %p136, %p137
      %p139 = scmp.ne.s32.totalorder %s127, %s128
      %p140 = scmp.eq.s32.totalorder %s29, 1
      %p141 = por %p139, %p140
      %p143 = scmp.ne.s32.totalorder %s128, %s142
      %p144 = scmp.eq.s32.totalorder %s29, 0
      %p145 = por %p143, %p144
      %s147 = sadd.s32 %s146, 1
      %p150 = scmp.eq.s32.totalorder %s23, 1
      %p151 = scmp.ne.s32.totalorder %s146, %s148
      %p152 = scmp.eq.s32.totalorder %s23, 0
      %p153 = por %p151, %p152
      %p154 = scmp.ne.s32.totalorder %s146, %s148
      %p155 = scmp.eq.s32.totalorder %s28, 1
      %p156 = por %p154, %p155
      %p157 = scmp.ne.s32.totalorder %s148, %s149
      %p158 = scmp.eq.s32.totalorder %s28, 0
      %p159 = por %p157, %p158
      %p160 = scmp.ne.s32.totalorder %s148, %s149
      %p161 = scmp.eq.s32.totalorder %s29, 1
      %p162 = por %p160, %p161
      %p164 = scmp.ne.s32.totalorder %s149, %s163
      %p165 = scmp.eq.s32.totalorder %s29, 0
      %p166 = por %p164, %p165
      %s168 = sadd.s32 %s167, 1
      %p171 = scmp.eq.s32.totalorder %s23, 1
      %p172 = scmp.ne.s32.totalorder %s167, %s169
      %p173 = scmp.eq.s32.totalorder %s23, 0
      %p174 = por %p172, %p173
      %p175 = scmp.ne.s32.totalorder %s167, %s169
      %p176 = scmp.eq.s32.totalorder %s28, 1
      %p177 = por %p175, %p176
      %p178 = scmp.ne.s32.totalorder %s169, %s170
      %p179 = scmp.eq.s32.totalorder %s28, 0
      %p180 = por %p178, %p179
      %p181 = scmp.ne.s32.totalorder %s169, %s170
      %p182 = scmp.eq.s32.totalorder %s29, 1
      %p183 = por %p181, %p182
      %p185 = scmp.ne.s32.totalorder %s170, %s184
      %p186 = scmp.eq.s32.totalorder %s29, 0
      %p187 = por %p185, %p186
      %s189 = sadd.s32 %s188, 1
      %p192 = scmp.eq.s32.totalorder %s23, 1
      %p193 = scmp.ne.s32.totalorder %s188, %s190
      %p194 = scmp.eq.s32.totalorder %s23, 0
      %p195 = por %p193, %p194
      %p196 = scmp.ne.s32.totalorder %s188, %s190
      %p197 = scmp.eq.s32.totalorder %s28, 1
      %p198 = por %p196, %p197
      %p199 = scmp.ne.s32.totalorder %s190, %s191
      %p200 = scmp.eq.s32.totalorder %s28, 0
      %p201 = por %p199, %p200
      %p202 = scmp.ne.s32.totalorder %s190, %s191
      %p203 = scmp.eq.s32.totalorder %s29, 1
      %p204 = por %p202, %p203
      %p206 = scmp.ne.s32.totalorder %s191, %s205
      %p207 = scmp.eq.s32.totalorder %s29, 0
      %p208 = por %p206, %p207
      %s209 = ssub.s32 %s23, %s30
      %p210 = scmp.eq.s32.totalorder %s209, 0
      %s212 = sadd.s32 %s211, 1
      %s213 = scalar_select %p210, %s211, %s212
      %p216 = pneg %p210
      %p217 = scmp.eq.s32.totalorder %s23, 1
      %p218 = por %p216, %p217
      %p219 = scmp.ne.s32.totalorder %s211, %s214
      %p220 = scmp.eq.s32.totalorder %s23, 0
      %p221 = por %p219, %p220
      %p222 = scmp.ne.s32.totalorder %s211, %s214
      %p223 = scmp.eq.s32.totalorder %s28, 1
      %p224 = por %p222, %p223
      %p225 = scmp.ne.s32.totalorder %s214, %s215
      %p226 = scmp.eq.s32.totalorder %s28, 0
      %p227 = por %p225, %p226
      %p228 = scmp.ne.s32.totalorder %s214, %s215
      %p229 = scmp.eq.s32.totalorder %s29, 1
      %p230 = por %p228, %p229
      %p232 = scmp.ne.s32.totalorder %s215, %s231
      %p233 = scmp.eq.s32.totalorder %s29, 0
      %p234 = por %p232, %p233
      %p235 = scmp.le.s32.totalorder 1, %s23
      %p236 = scmp.lt.s32.totalorder %s23, 3
      %p237 = pnand %p235, %p236
      %p238 = pneg %p237
      // Predicated region
      $region9: #{tpu_custom_call.1} parent=5 // pred_check
        _
      $region10: #{tpu_custom_call.1} parent=5 // pred_check_branch
        %240 = sbr.rel (%p237) target = $region12
      $region11: #{tpu_custom_call.1} parent=5 // pred_region
        %s241 = ssub.s32 %s23, 1
        // Predicated region
        $region13: #{tpu_custom_call.1} parent=11 // pred_check
          %p242 = pneg %p96
        $region14: #{tpu_custom_call.1} parent=11 // pred_check_branch
          %244 = sbr.rel (%p242) target = $region16
        $region15: #{tpu_custom_call.1} parent=11 // pred_region
          %s246 = ssub.s32 256, 256
          %247 = vsyncadd [#allocation7], %s246
          %s248 = sshll.u32 [#allocation6], 4
          %s249 = int_to_ptr.vmem [resolvable:$true] %s248
          %254 = dma.hbm_to_vmem [thread:$0]  %s2, 256, %s249, [#allocation7], 128, 128, 8
        $region16: #{tpu_custom_call.1} parent=11 // pred_fallthru
          _
        // Predicated region
        $region17: #{tpu_custom_call.1} parent=11 // pred_check
          %p255 = pneg %p117
        $region18: #{tpu_custom_call.1} parent=11 // pred_check_branch
          %257 = sbr.rel (%p255) target = $region20
        $region19: #{tpu_custom_call.1} parent=11 // pred_region
          _
        $region20: #{tpu_custom_call.1} parent=11 // pred_fallthru
          _
        // Predicated region
        $region21: #{tpu_custom_call.1} parent=11 // pred_check
          %p258 = pneg %p138
        $region22: #{tpu_custom_call.1} parent=11 // pred_check_branch
          %260 = sbr.rel (%p258) target = $region24
        $region23: #{tpu_custom_call.1} parent=11 // pred_region
          %s262 = ssub.s32 1024, 1024
          %263 = vsyncadd [#allocation7], %s262
          %s264 = sshll.u32 [#allocation8], 4
          %s265 = int_to_ptr.vmem [resolvable:$true] %s264
          %270 = dma.hbm_to_vmem [thread:$0]  %s4, 1024, %s265, [#allocation7], 256, 256, 16
        $region24: #{tpu_custom_call.1} parent=11 // pred_fallthru
          _
        // Predicated region
        $region25: #{tpu_custom_call.1} parent=11 // pred_check
          %p271 = pneg %p159
        $region26: #{tpu_custom_call.1} parent=11 // pred_check_branch
          %273 = sbr.rel (%p271) target = $region28
        $region27: #{tpu_custom_call.1} parent=11 // pred_region
          %s275 = ssub.s32 256, 256
          %276 = vsyncadd [#allocation10], %s275
          %s278 = sshll.u32 [#allocation9], 4
          %s279 = int_to_ptr.vmem [resolvable:$true] %s278
          %281 = dma.hbm_to_vmem [thread:$0]  %s5, 256, %s279, [#allocation10]
        $region28: #{tpu_custom_call.1} parent=11 // pred_fallthru
          _
        // Predicated region
        $region29: #{tpu_custom_call.1} parent=11 // pred_check
          %p282 = pneg %p180
        $region30: #{tpu_custom_call.1} parent=11 // pred_check_branch
          %284 = sbr.rel (%p282) target = $region32
        $region31: #{tpu_custom_call.1} parent=11 // pred_region
          _
        $region32: #{tpu_custom_call.1} parent=11 // pred_fallthru
          _
        // Predicated region
        $region33: #{tpu_custom_call.1} parent=11 // pred_check
          %p285 = pneg %p201
        $region34: #{tpu_custom_call.1} parent=11 // pred_check_branch
          %287 = sbr.rel (%p285) target = $region36
        $region35: #{tpu_custom_call.1} parent=11 // pred_region
          _
        $region36: #{tpu_custom_call.1} parent=11 // pred_fallthru
          _
      $region12: #{tpu_custom_call.1} parent=5 // pred_fallthru
        _
      %p288 = scmp.lt.s32.totalorder %s23, 2
      // Predicated region
      $region37: #{tpu_custom_call.1} parent=5 // pred_check
        %p289 = pneg %p288
      $region38: #{tpu_custom_call.1} parent=5 // pred_check_branch
        %291 = sbr.rel (%p289) target = $region40
      $region39: #{tpu_custom_call.1} parent=5 // pred_region
        // Predicated region
        $region41: #{tpu_custom_call.1} parent=39 // pred_check
          %p292 = pneg %p43
        $region42: #{tpu_custom_call.1} parent=39 // pred_check_branch
          %294 = sbr.rel (%p292) target = $region44
        $region43: #{tpu_custom_call.1} parent=39 // pred_region
          %s295 = sand.u32 %s33, 1
          %s296 = scalar_lea.sflag [#allocation4], %s295
          %s297 = sand.u32 %s33, 1
          %s298 = smul.addr %s297, 64
          %s299 = scalar_lea.vmem [#allocation3], %s298
          %s301 = ssub.s32 1024, 1024
          %302 = vsyncadd %s296, %s301
          %s303 = smul.addr %s23, 128
          %s304 = scalar_lea.hbm %s0, %s303
          %s305 = sshll.u32 %s299, 4
          %s306 = int_to_ptr.vmem [resolvable:$true] %s305
          %311 = dma.hbm_to_vmem [thread:$0]  %s304, 1024, %s306, %s296, 256, 128, 8
        $region44: #{tpu_custom_call.1} parent=39 // pred_fallthru
          _
        // Predicated region
        $region45: #{tpu_custom_call.1} parent=39 // pred_check
          %p312 = pneg %p69
        $region46: #{tpu_custom_call.1} parent=39 // pred_check_branch
          %314 = sbr.rel (%p312) target = $region48
        $region47: #{tpu_custom_call.1} parent=39 // pred_region
          %p315 = scmp.lt.s32.totalorder %s23, 1
          %s316 = scalar_select %p315, %s23, 1
          %s317 = smul.addr %s316, 8
          %s318 = scalar_lea.vmem %s1, %s317
        $region48: #{tpu_custom_call.1} parent=39 // pred_fallthru
          _
      $region40: #{tpu_custom_call.1} parent=5 // pred_fallthru
        _
      %p319 = scmp.le.s32.totalorder 1, %s23
      %p320 = scmp.lt.s32.totalorder %s23, 3
      %p321 = pnand %p319, %p320
      %p322 = pneg %p321
      // Predicated region
      $region49: #{tpu_custom_call.1} parent=5 // pred_check
        _
      $region50: #{tpu_custom_call.1} parent=5 // pred_check_branch
        %324 = sbr.rel (%p321) target = $region52
      $region51: #{tpu_custom_call.1} parent=5 // pred_region
        %s325 = ssub.s32 %s23, 1
        %s326 = sand.u32 %s36, 1
        %s327 = scalar_lea.sflag [#allocation4], %s326
        %s328 = sand.u32 %s36, 1
        %s329 = smul.addr %s328, 64
        %s330 = scalar_lea.vmem [#allocation3], %s329
        // Predicated region
        $region53: #{tpu_custom_call.1} parent=51 // pred_check
          %p331 = pneg %p49
        $region54: #{tpu_custom_call.1} parent=51 // pred_check_branch
          %333 = sbr.rel (%p331) target = $region56
        $region55: #{tpu_custom_call.1} parent=51 // pred_region
          %334 = dma.done %s327, 1024
        $region56: #{tpu_custom_call.1} parent=51 // pred_fallthru
          _
        // Predicated region
        $region57: #{tpu_custom_call.1} parent=51 // pred_check
          %p335 = pneg %p96
        $region58: #{tpu_custom_call.1} parent=51 // pred_check_branch
          %337 = sbr.rel (%p335) target = $region60
        $region59: #{tpu_custom_call.1} parent=51 // pred_region
          %338 = dma.done [#allocation7], 256
        $region60: #{tpu_custom_call.1} parent=51 // pred_fallthru
          _
        // Predicated region
        $region61: #{tpu_custom_call.1} parent=51 // pred_check
          %p339 = pneg %p138
        $region62: #{tpu_custom_call.1} parent=51 // pred_check_branch
          %341 = sbr.rel (%p339) target = $region64
        $region63: #{tpu_custom_call.1} parent=51 // pred_region
          %342 = dma.done [#allocation7], 1024
        $region64: #{tpu_custom_call.1} parent=51 // pred_fallthru
          _
        // Predicated region
        $region65: #{tpu_custom_call.1} parent=51 // pred_check
          %p343 = pneg %p159
        $region66: #{tpu_custom_call.1} parent=51 // pred_check_branch
          %345 = sbr.rel (%p343) target = $region68
        $region67: #{tpu_custom_call.1} parent=51 // pred_region
          %346 = dma.done [#allocation10], 256
        $region68: #{tpu_custom_call.1} parent=51 // pred_fallthru
          _
        %s347 = sand.u32 %s36, 1
        %s348 = scalar_lea.sflag [#allocation4], %s347
        %s349 = sand.u32 %s36, 1
        %s350 = smul.addr %s349, 64
        %s351 = scalar_lea.vmem [#allocation3], %s350
        %p352 = pneg %p49
        %p353 = pneg %p46
        %p354 = scmp.lt.s32.totalorder %s28, 1
        %s355 = scalar_select %p354, %s28, 1
        %s356 = smul.addr %s355, 8
        %s357 = scalar_lea.vmem %s1, %s356
        %p358 = pneg %p75
        %p359 = pneg %p72
        %p360 = pneg %p96
        %p361 = pneg %p93
        %p362 = pneg %p117
        %p363 = pneg %p114
        %p364 = pneg %p138
        %p365 = pneg %p135
        %p366 = pneg %p159
        %p367 = pneg %p156
        %p368 = pneg %p180
        %p369 = pneg %p177
        %p370 = pneg %p201
        %p371 = pneg %p198
        %p372 = pneg %p227
        %p373 = pneg %p224
        %s374 = sand.u32 %s214, 1
        %s375 = scalar_lea.sflag [#allocation5], %s374
        %s376 = sand.u32 %s214, 1
        %s377 = scalar_lea.vmem [#allocation11], %s376
        %p378 = scmp.lt.s32.totalorder %s28, 1
        %s379 = scalar_select %p378, %s28, 1
        %s380 = smul.addr %s379, 8
        %s381 = scalar_lea.vmem %s1, %s380
        %v382 = vld [vmem:[%s6] sm:$0x1]
        %v383 = vld [vmem:[%s6 + $0x1] sm:$0x3]
        %v384 = vld [vmem:[%s6 + $0x3] sm:$0x3]
        %v385 = vld [vmem:[%s330] sm:$0xff]
        %v386 = vld [vmem:[%s330 + $0x8] sm:$0xff]
        %v387 = vld [vmem:[%s330 + $0x10] sm:$0xff]
        %v388 = vld [vmem:[%s330 + $0x18] sm:$0xff]
        %v389 = vld [vmem:[%s330 + $0x20] sm:$0xff]
        %v390 = vld [vmem:[%s330 + $0x28] sm:$0xff]
        %v391 = vld [vmem:[%s330 + $0x30] sm:$0xff]
        %v392 = vld [vmem:[%s330 + $0x38] sm:$0xff]
        %v393 = vld [vmem:[#allocation6] sm:$0xff]
        %v394 = vld [vmem:[#allocation6 + $0x8] sm:$0xff]
        %v396 = vlaneseq
        %v397 = vshrl.u32 %v396, 7
        %v398 = vsub.s32 0, %v397
        %v399 = vrot.slane %v382, %v398
        %vm401 = vcmask 130048
        %v403 = vsel %vm401, %v385, 0
        %v406 = vsel %vm401, %v386, 0
        %v409 = vsel %vm401, %v387, 0
        %v412 = vsel %vm401, %v388, 0
        %v415 = vsel %vm401, %v389, 0
        %v418 = vsel %vm401, %v390, 0
        %v421 = vsel %vm401, %v391, 0
        %v424 = vsel %vm401, %v392, 0
        %426 = vmatprep.subr.mxu0 0.0
        %427 = vmatpush1.msra.mxu0 %v393
        %428 = vmatprep.subr.mxu0 0.0
        %429 = vmatpush1.msra.mxu0 %v394
        %430 = vmatprep.subr.mxu0 0.0
        %431 = vmatpush1.msra.mxu0 0.0
        %432 = vmatprep.subr.mxu0 0.0
        %433 = vmatpush1.msra.mxu0 0.0
        %434 = vmatprep.subr.mxu0 0.0
        %435 = vmatpush1.msra.mxu0 0.0
        %436 = vmatprep.subr.mxu0 0.0
        %437 = vmatpush1.msra.mxu0 0.0
        %438 = vmatprep.subr.mxu0 0.0
        %439 = vmatpush1.msra.mxu0 0.0
        %440 = vmatprep.subr.mxu0 0.0
        %441 = vmatpush1.msra.mxu0 0.0
        %442 = vmatprep.subr.mxu0 0.0
        %443 = vmatpush1.msra.mxu0 0.0
        %444 = vmatprep.subr.mxu0 0.0
        %445 = vmatpush1.msra.mxu0 0.0
        %446 = vmatprep.subr.mxu0 0.0
        %447 = vmatpush1.msra.mxu0 0.0
        %448 = vmatprep.subr.mxu0 0.0
        %449 = vmatpush1.msra.mxu0 0.0
        %450 = vmatprep.subr.mxu0 0.0
        %451 = vmatpush1.msra.mxu0 0.0
        %452 = vmatprep.subr.mxu0 0.0
        %453 = vmatpush1.msra.mxu0 0.0
        %454 = vmatprep.subr.mxu0 0.0
        %455 = vmatpush1.msra.mxu0 0.0
        %456 = vmatprep.subr.mxu0 0.0
        %457 = vmatpush1.msra.mxu0 0.0
        %458 = vmatprep.subr.mxu0 0.0
        %459 = vmatpush1.msra.mxu0 0.0
        %460 = vmatprep.subr.mxu0 0.0
        %461 = vmatpush1.msra.mxu0 0.0
        %462 = vmatprep.subr.mxu0 0.0
        %463 = vmatpush1.msra.mxu0 0.0
        %464 = vmatprep.subr.mxu0 0.0
        %465 = vmatpush1.msra.mxu0 0.0
        %466 = vmatprep.subr.mxu0 0.0
        %467 = vmatpush1.msra.mxu0 0.0
        %468 = vmatprep.subr.mxu0 0.0
        %469 = vmatpush1.msra.mxu0 0.0
        %470 = vmatprep.subr.mxu0 0.0
        %471 = vmatpush1.msra.mxu0 0.0
        %472 = vmatprep.subr.mxu0 0.0
        %473 = vmatpush1.msra.mxu0 0.0
        %474 = vmatprep.subr.mxu0 0.0
        %475 = vmatpush1.msra.mxu0 0.0
        %476 = vmatprep.subr.mxu0 0.0
        %477 = vmatpush1.msra.mxu0 0.0
        %478 = vmatprep.subr.mxu0 0.0
        %479 = vmatpush1.msra.mxu0 0.0
        %480 = vmatprep.subr.mxu0 0.0
        %481 = vmatpush1.msra.mxu0 0.0
        %482 = vmatprep.subr.mxu0 0.0
        %483 = vmatpush1.msra.mxu0 0.0
        %484 = vmatprep.subr.mxu0 0.0
        %485 = vmatpush1.msra.mxu0 0.0
        %486 = vmatprep.subr.mxu0 0.0
        %487 = vmatpush1.msra.mxu0 0.0
        %488 = vmatprep.subr.mxu0 0.0
        %489 = vmatpush1.msra.mxu0 0.0
        %490 = vmatprep.mubr.f32.mxu0 0.0
        %491 = vmatmul.mubr.f32.gmra.mrb[0].mxu0 %v403
        %v492 = vpop.f32.mrb[0].mxu0
        %v493 = vadd.f32 %v399, %v492
        %v494 = vpop.f32.mrb[0].mxu0
        %495 = vmatprep.mubr.f32.mxu0 0.0
        %496 = vmatmul.mubr.f32.gmra.mrb[0].mxu0 %v406
        %v497 = vpop.f32.mrb[0].mxu0
        %v498 = vadd.f32 %v399, %v497
        %v499 = vpop.f32.mrb[0].mxu0
        %500 = vmatprep.mubr.f32.mxu0 0.0
        %501 = vmatmul.mubr.f32.gmra.mrb[0].mxu0 %v409
        %v502 = vpop.f32.mrb[0].mxu0
        %v503 = vadd.f32 %v399, %v502
        %v504 = vpop.f32.mrb[0].mxu0
        %505 = vmatprep.mubr.f32.mxu0 0.0
        %506 = vmatmul.mubr.f32.gmra.mrb[0].mxu0 %v412
        %v507 = vpop.f32.mrb[0].mxu0
        %v508 = vadd.f32 %v399, %v507
        %v509 = vpop.f32.mrb[0].mxu0
        %510 = vmatprep.mubr.f32.mxu0 0.0
        %511 = vmatmul.mubr.f32.gmra.mrb[0].mxu0 %v415
        %v512 = vpop.f32.mrb[0].mxu0
        %v513 = vadd.f32 %v399, %v512
        %v514 = vpop.f32.mrb[0].mxu0
        %515 = vmatprep.mubr.f32.mxu0 0.0
        %516 = vmatmul.mubr.f32.gmra.mrb[0].mxu0 %v418
        %v517 = vpop.f32.mrb[0].mxu0
        %v518 = vadd.f32 %v399, %v517
        %v519 = vpop.f32.mrb[0].mxu0
        %520 = vmatprep.mubr.f32.mxu0 0.0
        %521 = vmatmul.mubr.f32.gmra.mrb[0].mxu0 %v421
        %v522 = vpop.f32.mrb[0].mxu0
        %v523 = vadd.f32 %v399, %v522
        %v524 = vpop.f32.mrb[0].mxu0
        %525 = vmatprep.mubr.f32.mxu0 0.0
        %526 = vmatmul.mubr.f32.gmra.mrb[0].mxu0 %v424
        %v527 = vpop.f32.mrb[0].mxu0
        %v528 = vadd.f32 %v399, %v527
        %v529 = vpop.f32.mrb[0].mxu0
        %530 = vdwg.mxu0
        %v531 = vld [vmem:[%s381] sm:$0xff]
        %v532 = vld [vmem:[#allocation9] sm:$0x7f]
        %v533 = vld [vmem:[#allocation9 + $0x8] sm:$0x7f]
        %v535 = vlaneseq
        %v536 = vshrl.u32 %v535, 7
        %v537 = vsub.s32 0, %v536
        %v538 = vrot.slane %v383, %v537
        %v539 = vlaneseq
        %v540 = vshrl.u32 %v539, 7
        %v541 = vsub.s32 1, %v540
        %v542 = vrot.slane %v383, %v541
        %vm545 = vcmask 56320
        %v547 = vsel %vm545, %v531, 0
        %vm549 = vcmask 1046528
        %v551 = vsel %vm549, %v532, 0
        %v554 = vsel %vm549, %v533, 0
        %556 = vmatprep.subr.mxu0 %v554
        %557 = vmatpush1.msra.mxu0 %v551
        %558 = vmatprep.subr.mxu0 0.0
        %559 = vmatpush1.msra.mxu0 0.0
        %560 = vmatprep.subr.mxu0 0.0
        %561 = vmatpush1.msra.mxu0 0.0
        %562 = vmatprep.subr.mxu0 0.0
        %563 = vmatpush1.msra.mxu0 0.0
        %564 = vmatprep.subr.mxu0 0.0
        %565 = vmatpush1.msra.mxu0 0.0
        %566 = vmatprep.subr.mxu0 0.0
        %567 = vmatpush1.msra.mxu0 0.0
        %568 = vmatprep.subr.mxu0 0.0
        %569 = vmatpush1.msra.mxu0 0.0
        %570 = vmatprep.subr.mxu0 0.0
        %571 = vmatpush1.msra.mxu0 0.0
        %572 = vmatprep.subr.mxu0 0.0
        %573 = vmatpush1.msra.mxu0 0.0
        %574 = vmatprep.subr.mxu0 0.0
        %575 = vmatpush1.msra.mxu0 0.0
        %576 = vmatprep.subr.mxu0 0.0
        %577 = vmatpush1.msra.mxu0 0.0
        %578 = vmatprep.subr.mxu0 0.0
        %579 = vmatpush1.msra.mxu0 0.0
        %580 = vmatprep.subr.mxu0 0.0
        %581 = vmatpush1.msra.mxu0 0.0
        %582 = vmatprep.subr.mxu0 0.0
        %583 = vmatpush1.msra.mxu0 0.0
        %584 = vmatprep.subr.mxu0 0.0
        %585 = vmatpush1.msra.mxu0 0.0
        %586 = vmatprep.subr.mxu0 0.0
        %587 = vmatpush1.msra.mxu0 0.0
        %588 = vmatprep.subr.mxu0 0.0
        %589 = vmatpush1.msra.mxu0 0.0
        %590 = vmatprep.subr.mxu0 0.0
        %591 = vmatpush1.msra.mxu0 0.0
        %592 = vmatprep.subr.mxu0 0.0
        %593 = vmatpush1.msra.mxu0 0.0
        %594 = vmatprep.subr.mxu0 0.0
        %595 = vmatpush1.msra.mxu0 0.0
        %596 = vmatprep.subr.mxu0 0.0
        %597 = vmatpush1.msra.mxu0 0.0
        %598 = vmatprep.subr.mxu0 0.0
        %599 = vmatpush1.msra.mxu0 0.0
        %600 = vmatprep.subr.mxu0 0.0
        %601 = vmatpush1.msra.mxu0 0.0
        %602 = vmatprep.subr.mxu0 0.0
        %603 = vmatpush1.msra.mxu0 0.0
        %604 = vmatprep.subr.mxu0 0.0
        %605 = vmatpush1.msra.mxu0 0.0
        %606 = vmatprep.subr.mxu0 0.0
        %607 = vmatpush1.msra.mxu0 0.0
        %608 = vmatprep.subr.mxu0 0.0
        %609 = vmatpush1.msra.mxu0 0.0
        %610 = vmatprep.subr.mxu0 0.0
        %611 = vmatpush1.msra.mxu0 0.0
        %612 = vmatprep.subr.mxu0 0.0
        %613 = vmatpush1.msra.mxu0 0.0
        %614 = vmatprep.subr.mxu0 0.0
        %615 = vmatpush1.msra.mxu0 0.0
        %616 = vmatprep.subr.mxu0 0.0
        %617 = vmatpush1.msra.mxu0 0.0
        %618 = vmatprep.subr.mxu0 0.0
        %619 = vmatpush1.msra.mxu0 0.0
        %620 = vmatprep.mubr.f32.mxu0 0.0
        %621 = vmatmul.mubr.f32.gmra.mrb[0].mxu0 %v547
        %v622 = vpop.f32.mrb[0].mxu0
        %v623 = vadd.f32 %v538, %v622
        %v624 = vpop.f32.mrb[0].mxu0
        %v625 = vadd.f32 %v542, %v624
        %626 = vdwg.mxu0
        %v627 = vld [vmem:[%s3] sm:$0xff]
        %v628 = vld [vmem:[%s3 + $0x8] sm:$0xff]
        %v629 = vld [vmem:[%s3 + $0x10] sm:$0xff]
        %v630 = vld [vmem:[%s3 + $0x18] sm:$0xff]
        %vm631 = vcmask 261120
        %v633 = vsel %vm631, 0.0, 0
        %635 = vmatprep.subr.mxu0 0.0
        %636 = vmatpush1.msra.mxu0 %v627
        %637 = vmatprep.subr.mxu0 0.0
        %638 = vmatpush1.msra.mxu0 %v628
        %639 = vmatprep.subr.mxu0 0.0
        %640 = vmatpush1.msra.mxu0 %v629
        %641 = vmatprep.subr.mxu0 0.0
        %642 = vmatpush1.msra.mxu0 %v630
        %643 = vmatprep.subr.mxu0 0.0
        %644 = vmatpush1.msra.mxu0 0.0
        %645 = vmatprep.subr.mxu0 0.0
        %646 = vmatpush1.msra.mxu0 0.0
        %647 = vmatprep.subr.mxu0 0.0
        %648 = vmatpush1.msra.mxu0 0.0
        %649 = vmatprep.subr.mxu0 0.0
        %650 = vmatpush1.msra.mxu0 0.0
        %651 = vmatprep.subr.mxu0 0.0
        %652 = vmatpush1.msra.mxu0 0.0
        %653 = vmatprep.subr.mxu0 0.0
        %654 = vmatpush1.msra.mxu0 0.0
        %655 = vmatprep.subr.mxu0 0.0
        %656 = vmatpush1.msra.mxu0 0.0
        %657 = vmatprep.subr.mxu0 0.0
        %658 = vmatpush1.msra.mxu0 0.0
        %659 = vmatprep.subr.mxu0 0.0
        %660 = vmatpush1.msra.mxu0 0.0
        %661 = vmatprep.subr.mxu0 0.0
        %662 = vmatpush1.msra.mxu0 0.0
        %663 = vmatprep.subr.mxu0 0.0
        %664 = vmatpush1.msra.mxu0 0.0
        %665 = vmatprep.subr.mxu0 0.0
        %666 = vmatpush1.msra.mxu0 0.0
        %667 = vmatprep.subr.mxu0 0.0
        %668 = vmatpush1.msra.mxu0 0.0
        %669 = vmatprep.subr.mxu0 0.0
        %670 = vmatpush1.msra.mxu0 0.0
        %671 = vmatprep.subr.mxu0 0.0
        %672 = vmatpush1.msra.mxu0 0.0
        %673 = vmatprep.subr.mxu0 0.0
        %674 = vmatpush1.msra.mxu0 0.0
        %675 = vmatprep.subr.mxu0 0.0
        %676 = vmatpush1.msra.mxu0 0.0
        %677 = vmatprep.subr.mxu0 0.0
        %678 = vmatpush1.msra.mxu0 0.0
        %679 = vmatprep.subr.mxu0 0.0
        %680 = vmatpush1.msra.mxu0 0.0
        %681 = vmatprep.subr.mxu0 0.0
        %682 = vmatpush1.msra.mxu0 0.0
        %683 = vmatprep.subr.mxu0 0.0
        %684 = vmatpush1.msra.mxu0 0.0
        %685 = vmatprep.subr.mxu0 0.0
        %686 = vmatpush1.msra.mxu0 0.0
        %687 = vmatprep.subr.mxu0 0.0
        %688 = vmatpush1.msra.mxu0 0.0
        %689 = vmatprep.subr.mxu0 0.0
        %690 = vmatpush1.msra.mxu0 0.0
        %691 = vmatprep.subr.mxu0 0.0
        %692 = vmatpush1.msra.mxu0 0.0
        %693 = vmatprep.subr.mxu0 0.0
        %694 = vmatpush1.msra.mxu0 0.0
        %695 = vmatprep.subr.mxu0 0.0
        %696 = vmatpush1.msra.mxu0 0.0
        %697 = vmatprep.subr.mxu0 0.0
        %698 = vmatpush1.msra.mxu0 0.0
        %699 = vmatprep.mubr.f32.mxu0 0.0
        %700 = vmatmul.mubr.f32.gmra.mrb[0].mxu0 %v633
        %v701 = vpop.f32.mrb[0].mxu0
        %v702 = vadd.f32 0.0, %v701
        %v703 = vpop.f32.mrb[0].mxu0
        %704 = vdwg.mxu0
        %v705 = vadd.f32 %v493, %v702
        %v706 = vxor.u32 %v705, 2147483648
        %v707 = vmul.f32 %v706, 1.442695
        %v708 = vpow.pop %v707
        %v709 = vadd.f32 %v708, 1.0
        %v710 = vrcp.pop %v709
        %v711 = vmul.f32 1.0, %v710
        %v712 = vmul.f32 %v711, 2.0
        %v713 = vsub.f32 %v712, 1.0
        %v714 = vmul.f32 %v711, 0.0
        %716 = vrot.lane.b32.xlu0 %v713, 64
        %v717 = vpop.permute.xlu0 %716
        %v719 = vmul.f32 %v711, %v717
        %721 = vrot.lane.b32.xlu0 %v719, 32
        %v722 = vpop.permute.xlu0 %721
        %v724 = vadd.f32 %v714, %v722
        %v725 = vtanh.pop %v724
        %727 = vrot.lane.b32.xlu0 %v725, 64
        %v728 = vpop.permute.xlu0 %727
        %v730 = vmul.f32 %v711, %v728
        %732 = vrot.lane.b32.xlu0 %v730, 32
        %v733 = vpop.permute.xlu0 %732
        %v734 = vsel %vm631, %v733, 0
        %736 = vmatprep.subr.mxu0 0.0
        %737 = vmatpush1.msra.mxu0 %v627
        %738 = vmatprep.subr.mxu0 0.0
        %739 = vmatpush1.msra.mxu0 %v628
        %740 = vmatprep.subr.mxu0 0.0
        %741 = vmatpush1.msra.mxu0 %v629
        %742 = vmatprep.subr.mxu0 0.0
        %743 = vmatpush1.msra.mxu0 %v630
        %744 = vmatprep.subr.mxu0 0.0
        %745 = vmatpush1.msra.mxu0 0.0
        %746 = vmatprep.subr.mxu0 0.0
        %747 = vmatpush1.msra.mxu0 0.0
        %748 = vmatprep.subr.mxu0 0.0
        %749 = vmatpush1.msra.mxu0 0.0
        %750 = vmatprep.subr.mxu0 0.0
        %751 = vmatpush1.msra.mxu0 0.0
        %752 = vmatprep.subr.mxu0 0.0
        %753 = vmatpush1.msra.mxu0 0.0
        %754 = vmatprep.subr.mxu0 0.0
        %755 = vmatpush1.msra.mxu0 0.0
        %756 = vmatprep.subr.mxu0 0.0
        %757 = vmatpush1.msra.mxu0 0.0
        %758 = vmatprep.subr.mxu0 0.0
        %759 = vmatpush1.msra.mxu0 0.0
        %760 = vmatprep.subr.mxu0 0.0
        %761 = vmatpush1.msra.mxu0 0.0
        %762 = vmatprep.subr.mxu0 0.0
        %763 = vmatpush1.msra.mxu0 0.0
        %764 = vmatprep.subr.mxu0 0.0
        %765 = vmatpush1.msra.mxu0 0.0
        %766 = vmatprep.subr.mxu0 0.0
        %767 = vmatpush1.msra.mxu0 0.0
        %768 = vmatprep.subr.mxu0 0.0
        %769 = vmatpush1.msra.mxu0 0.0
        %770 = vmatprep.subr.mxu0 0.0
        %771 = vmatpush1.msra.mxu0 0.0
        %772 = vmatprep.subr.mxu0 0.0
        %773 = vmatpush1.msra.mxu0 0.0
        %774 = vmatprep.subr.mxu0 0.0
        %775 = vmatpush1.msra.mxu0 0.0
        %776 = vmatprep.subr.mxu0 0.0
        %777 = vmatpush1.msra.mxu0 0.0
        %778 = vmatprep.subr.mxu0 0.0
        %779 = vmatpush1.msra.mxu0 0.0
        %780 = vmatprep.subr.mxu0 0.0
        %781 = vmatpush1.msra.mxu0 0.0
        %782 = vmatprep.subr.mxu0 0.0
        %783 = vmatpush1.msra.mxu0 0.0
        %784 = vmatprep.subr.mxu0 0.0
        %785 = vmatpush1.msra.mxu0 0.0
        %786 = vmatprep.subr.mxu0 0.0
        %787 = vmatpush1.msra.mxu0 0.0
        %788 = vmatprep.subr.mxu0 0.0
        %789 = vmatpush1.msra.mxu0 0.0
        %790 = vmatprep.subr.mxu0 0.0
        %791 = vmatpush1.msra.mxu0 0.0
        %792 = vmatprep.subr.mxu0 0.0
        %793 = vmatpush1.msra.mxu0 0.0
        %794 = vmatprep.subr.mxu0 0.0
        %795 = vmatpush1.msra.mxu0 0.0
        %796 = vmatprep.subr.mxu0 0.0
        %797 = vmatpush1.msra.mxu0 0.0
        %798 = vmatprep.subr.mxu0 0.0
        %799 = vmatpush1.msra.mxu0 0.0
        %800 = vmatprep.mubr.f32.mxu0 0.0
        %801 = vmatmul.mubr.f32.gmra.mrb[0].mxu0 %v734
        %v802 = vpop.f32.mrb[0].mxu0
        %v803 = vadd.f32 0.0, %v802
        %v804 = vpop.f32.mrb[0].mxu0
        %805 = vdwg.mxu0
        %v806 = vadd.f32 %v498, %v803
        %v807 = vxor.u32 %v806, 2147483648
        %v808 = vmul.f32 %v807, 1.442695
        %v809 = vpow.pop %v808
        %v810 = vadd.f32 %v809, 1.0
        %v811 = vrcp.pop %v810
        %v812 = vmul.f32 1.0, %v811
        %v813 = vmul.f32 %v812, 2.0
        %v814 = vsub.f32 %v813, 1.0
        %v815 = vmul.f32 %v812, %v724
        %817 = vrot.lane.b32.xlu0 %v814, 64
        %v818 = vpop.permute.xlu0 %817
        %v820 = vmul.f32 %v812, %v818
        %822 = vrot.lane.b32.xlu0 %v820, 32
        %v823 = vpop.permute.xlu0 %822
        %v825 = vadd.f32 %v815, %v823
        %v826 = vtanh.pop %v825
        %828 = vrot.lane.b32.xlu0 %v826, 64
        %v829 = vpop.permute.xlu0 %828
        %v831 = vmul.f32 %v812, %v829
        %833 = vrot.lane.b32.xlu0 %v831, 32
        %v834 = vpop.permute.xlu0 %833
        %v835 = vsel %vm631, %v834, 0
        %837 = vmatprep.subr.mxu0 0.0
        %838 = vmatpush1.msra.mxu0 %v627
        %839 = vmatprep.subr.mxu0 0.0
        %840 = vmatpush1.msra.mxu0 %v628
        %841 = vmatprep.subr.mxu0 0.0
        %842 = vmatpush1.msra.mxu0 %v629
        %843 = vmatprep.subr.mxu0 0.0
        %844 = vmatpush1.msra.mxu0 %v630
        %845 = vmatprep.subr.mxu0 0.0
        %846 = vmatpush1.msra.mxu0 0.0
        %847 = vmatprep.subr.mxu0 0.0
        %848 = vmatpush1.msra.mxu0 0.0
        %849 = vmatprep.subr.mxu0 0.0
        %850 = vmatpush1.msra.mxu0 0.0
        %851 = vmatprep.subr.mxu0 0.0
        %852 = vmatpush1.msra.mxu0 0.0
        %853 = vmatprep.subr.mxu0 0.0
        %854 = vmatpush1.msra.mxu0 0.0
        %855 = vmatprep.subr.mxu0 0.0
        %856 = vmatpush1.msra.mxu0 0.0
        %857 = vmatprep.subr.mxu0 0.0
        %858 = vmatpush1.msra.mxu0 0.0
        %859 = vmatprep.subr.mxu0 0.0
        %860 = vmatpush1.msra.mxu0 0.0
        %861 = vmatprep.subr.mxu0 0.0
        %862 = vmatpush1.msra.mxu0 0.0
        %863 = vmatprep.subr.mxu0 0.0
        %864 = vmatpush1.msra.mxu0 0.0
        %865 = vmatprep.subr.mxu0 0.0
        %866 = vmatpush1.msra.mxu0 0.0
        %867 = vmatprep.subr.mxu0 0.0
        %868 = vmatpush1.msra.mxu0 0.0
        %869 = vmatprep.subr.mxu0 0.0
        %870 = vmatpush1.msra.mxu0 0.0
        %871 = vmatprep.subr.mxu0 0.0
        %872 = vmatpush1.msra.mxu0 0.0
        %873 = vmatprep.subr.mxu0 0.0
        %874 = vmatpush1.msra.mxu0 0.0
        %875 = vmatprep.subr.mxu0 0.0
        %876 = vmatpush1.msra.mxu0 0.0
        %877 = vmatprep.subr.mxu0 0.0
        %878 = vmatpush1.msra.mxu0 0.0
        %879 = vmatprep.subr.mxu0 0.0
        %880 = vmatpush1.msra.mxu0 0.0
        %881 = vmatprep.subr.mxu0 0.0
        %882 = vmatpush1.msra.mxu0 0.0
        %883 = vmatprep.subr.mxu0 0.0
        %884 = vmatpush1.msra.mxu0 0.0
        %885 = vmatprep.subr.mxu0 0.0
        %886 = vmatpush1.msra.mxu0 0.0
        %887 = vmatprep.subr.mxu0 0.0
        %888 = vmatpush1.msra.mxu0 0.0
        %889 = vmatprep.subr.mxu0 0.0
        %890 = vmatpush1.msra.mxu0 0.0
        %891 = vmatprep.subr.mxu0 0.0
        %892 = vmatpush1.msra.mxu0 0.0
        %893 = vmatprep.subr.mxu0 0.0
        %894 = vmatpush1.msra.mxu0 0.0
        %895 = vmatprep.subr.mxu0 0.0
        %896 = vmatpush1.msra.mxu0 0.0
        %897 = vmatprep.subr.mxu0 0.0
        %898 = vmatpush1.msra.mxu0 0.0
        %899 = vmatprep.subr.mxu0 0.0
        %900 = vmatpush1.msra.mxu0 0.0
        %901 = vmatprep.mubr.f32.mxu0 0.0
        %902 = vmatmul.mubr.f32.gmra.mrb[0].mxu0 %v835
        %v903 = vpop.f32.mrb[0].mxu0
        %v904 = vadd.f32 0.0, %v903
        %v905 = vpop.f32.mrb[0].mxu0
        %906 = vdwg.mxu0
        %v907 = vadd.f32 %v503, %v904
        %v908 = vxor.u32 %v907, 2147483648
        %v909 = vmul.f32 %v908, 1.442695
        %v910 = vpow.pop %v909
        %v911 = vadd.f32 %v910, 1.0
        %v912 = vrcp.pop %v911
        %v913 = vmul.f32 1.0, %v912
        %v914 = vmul.f32 %v913, 2.0
        %v915 = vsub.f32 %v914, 1.0
        %v916 = vmul.f32 %v913, %v825
        %918 = vrot.lane.b32.xlu0 %v915, 64
        %v919 = vpop.permute.xlu0 %918
        %v921 = vmul.f32 %v913, %v919
        %923 = vrot.lane.b32.xlu0 %v921, 32
        %v924 = vpop.permute.xlu0 %923
        %v926 = vadd.f32 %v916, %v924
        %v927 = vtanh.pop %v926
        %929 = vrot.lane.b32.xlu0 %v927, 64
        %v930 = vpop.permute.xlu0 %929
        %v932 = vmul.f32 %v913, %v930
        %934 = vrot.lane.b32.xlu0 %v932, 32
        %v935 = vpop.permute.xlu0 %934
        %v936 = vsel %vm631, %v935, 0
        %938 = vmatprep.subr.mxu0 0.0
        %939 = vmatpush1.msra.mxu0 %v627
        %940 = vmatprep.subr.mxu0 0.0
        %941 = vmatpush1.msra.mxu0 %v628
        %942 = vmatprep.subr.mxu0 0.0
        %943 = vmatpush1.msra.mxu0 %v629
        %944 = vmatprep.subr.mxu0 0.0
        %945 = vmatpush1.msra.mxu0 %v630
        %946 = vmatprep.subr.mxu0 0.0
        %947 = vmatpush1.msra.mxu0 0.0
        %948 = vmatprep.subr.mxu0 0.0
        %949 = vmatpush1.msra.mxu0 0.0
        %950 = vmatprep.subr.mxu0 0.0
        %951 = vmatpush1.msra.mxu0 0.0
        %952 = vmatprep.subr.mxu0 0.0
        %953 = vmatpush1.msra.mxu0 0.0
        %954 = vmatprep.subr.mxu0 0.0
        %955 = vmatpush1.msra.mxu0 0.0
        %956 = vmatprep.subr.mxu0 0.0
        %957 = vmatpush1.msra.mxu0 0.0
        %958 = vmatprep.subr.mxu0 0.0
        %959 = vmatpush1.msra.mxu0 0.0
        %960 = vmatprep.subr.mxu0 0.0
        %961 = vmatpush1.msra.mxu0 0.0
        %962 = vmatprep.subr.mxu0 0.0
        %963 = vmatpush1.msra.mxu0 0.0
        %964 = vmatprep.subr.mxu0 0.0
        %965 = vmatpush1.msra.mxu0 0.0
        %966 = vmatprep.subr.mxu0 0.0
        %967 = vmatpush1.msra.mxu0 0.0
        %968 = vmatprep.subr.mxu0 0.0
        %969 = vmatpush1.msra.mxu0 0.0
        %970 = vmatprep.subr.mxu0 0.0
        %971 = vmatpush1.msra.mxu0 0.0
        %972 = vmatprep.subr.mxu0 0.0
        %973 = vmatpush1.msra.mxu0 0.0
        %974 = vmatprep.subr.mxu0 0.0
        %975 = vmatpush1.msra.mxu0 0.0
        %976 = vmatprep.subr.mxu0 0.0
        %977 = vmatpush1.msra.mxu0 0.0
        %978 = vmatprep.subr.mxu0 0.0
        %979 = vmatpush1.msra.mxu0 0.0
        %980 = vmatprep.subr.mxu0 0.0
        %981 = vmatpush1.msra.mxu0 0.0
        %982 = vmatprep.subr.mxu0 0.0
        %983 = vmatpush1.msra.mxu0 0.0
        %984 = vmatprep.subr.mxu0 0.0
        %985 = vmatpush1.msra.mxu0 0.0
        %986 = vmatprep.subr.mxu0 0.0
        %987 = vmatpush1.msra.mxu0 0.0
        %988 = vmatprep.subr.mxu0 0.0
        %989 = vmatpush1.msra.mxu0 0.0
        %990 = vmatprep.subr.mxu0 0.0
        %991 = vmatpush1.msra.mxu0 0.0
        %992 = vmatprep.subr.mxu0 0.0
        %993 = vmatpush1.msra.mxu0 0.0
        %994 = vmatprep.subr.mxu0 0.0
        %995 = vmatpush1.msra.mxu0 0.0
        %996 = vmatprep.subr.mxu0 0.0
        %997 = vmatpush1.msra.mxu0 0.0
        %998 = vmatprep.subr.mxu0 0.0
        %999 = vmatpush1.msra.mxu0 0.0
        %1000 = vmatprep.subr.mxu0 0.0
        %1001 = vmatpush1.msra.mxu0 0.0
        %1002 = vmatprep.mubr.f32.mxu0 0.0
        %1003 = vmatmul.mubr.f32.gmra.mrb[0].mxu0 %v936
        %v1004 = vpop.f32.mrb[0].mxu0
        %v1005 = vadd.f32 0.0, %v1004
        %v1006 = vpop.f32.mrb[0].mxu0
        %1007 = vdwg.mxu0
        %v1008 = vadd.f32 %v508, %v1005
        %v1009 = vxor.u32 %v1008, 2147483648
        %v1010 = vmul.f32 %v1009, 1.442695
        %v1011 = vpow.pop %v1010
        %v1012 = vadd.f32 %v1011, 1.0
        %v1013 = vrcp.pop %v1012
        %v1014 = vmul.f32 1.0, %v1013
        %v1015 = vmul.f32 %v1014, 2.0
        %v1016 = vsub.f32 %v1015, 1.0
        %v1017 = vmul.f32 %v1014, %v926
        %1019 = vrot.lane.b32.xlu0 %v1016, 64
        %v1020 = vpop.permute.xlu0 %1019
        %v1022 = vmul.f32 %v1014, %v1020
        %1024 = vrot.lane.b32.xlu0 %v1022, 32
        %v1025 = vpop.permute.xlu0 %1024
        %v1027 = vadd.f32 %v1017, %v1025
        %v1028 = vtanh.pop %v1027
        %1030 = vrot.lane.b32.xlu0 %v1028, 64
        %v1031 = vpop.permute.xlu0 %1030
        %v1033 = vmul.f32 %v1014, %v1031
        %1035 = vrot.lane.b32.xlu0 %v1033, 32
        %v1036 = vpop.permute.xlu0 %1035
        %v1037 = vsel %vm631, %v1036, 0
        %1039 = vmatprep.subr.mxu0 0.0
        %1040 = vmatpush1.msra.mxu0 %v627
        %1041 = vmatprep.subr.mxu0 0.0
        %1042 = vmatpush1.msra.mxu0 %v628
        %1043 = vmatprep.subr.mxu0 0.0
        %1044 = vmatpush1.msra.mxu0 %v629
        %1045 = vmatprep.subr.mxu0 0.0
        %1046 = vmatpush1.msra.mxu0 %v630
        %1047 = vmatprep.subr.mxu0 0.0
        %1048 = vmatpush1.msra.mxu0 0.0
        %1049 = vmatprep.subr.mxu0 0.0
        %1050 = vmatpush1.msra.mxu0 0.0
        %1051 = vmatprep.subr.mxu0 0.0
        %1052 = vmatpush1.msra.mxu0 0.0
        %1053 = vmatprep.subr.mxu0 0.0
        %1054 = vmatpush1.msra.mxu0 0.0
        %1055 = vmatprep.subr.mxu0 0.0
        %1056 = vmatpush1.msra.mxu0 0.0
        %1057 = vmatprep.subr.mxu0 0.0
        %1058 = vmatpush1.msra.mxu0 0.0
        %1059 = vmatprep.subr.mxu0 0.0
        %1060 = vmatpush1.msra.mxu0 0.0
        %1061 = vmatprep.subr.mxu0 0.0
        %1062 = vmatpush1.msra.mxu0 0.0
        %1063 = vmatprep.subr.mxu0 0.0
        %1064 = vmatpush1.msra.mxu0 0.0
        %1065 = vmatprep.subr.mxu0 0.0
        %1066 = vmatpush1.msra.mxu0 0.0
        %1067 = vmatprep.subr.mxu0 0.0
        %1068 = vmatpush1.msra.mxu0 0.0
        %1069 = vmatprep.subr.mxu0 0.0
        %1070 = vmatpush1.msra.mxu0 0.0
        %1071 = vmatprep.subr.mxu0 0.0
        %1072 = vmatpush1.msra.mxu0 0.0
        %1073 = vmatprep.subr.mxu0 0.0
        %1074 = vmatpush1.msra.mxu0 0.0
        %1075 = vmatprep.subr.mxu0 0.0
        %1076 = vmatpush1.msra.mxu0 0.0
        %1077 = vmatprep.subr.mxu0 0.0
        %1078 = vmatpush1.msra.mxu0 0.0
        %1079 = vmatprep.subr.mxu0 0.0
        %1080 = vmatpush1.msra.mxu0 0.0
        %1081 = vmatprep.subr.mxu0 0.0
        %1082 = vmatpush1.msra.mxu0 0.0
        %1083 = vmatprep.subr.mxu0 0.0
        %1084 = vmatpush1.msra.mxu0 0.0
        %1085 = vmatprep.subr.mxu0 0.0
        %1086 = vmatpush1.msra.mxu0 0.0
        %1087 = vmatprep.subr.mxu0 0.0
        %1088 = vmatpush1.msra.mxu0 0.0
        %1089 = vmatprep.subr.mxu0 0.0
        %1090 = vmatpush1.msra.mxu0 0.0
        %1091 = vmatprep.subr.mxu0 0.0
        %1092 = vmatpush1.msra.mxu0 0.0
        %1093 = vmatprep.subr.mxu0 0.0
        %1094 = vmatpush1.msra.mxu0 0.0
        %1095 = vmatprep.subr.mxu0 0.0
        %1096 = vmatpush1.msra.mxu0 0.0
        %1097 = vmatprep.subr.mxu0 0.0
        %1098 = vmatpush1.msra.mxu0 0.0
        %1099 = vmatprep.subr.mxu0 0.0
        %1100 = vmatpush1.msra.mxu0 0.0
        %1101 = vmatprep.subr.mxu0 0.0
        %1102 = vmatpush1.msra.mxu0 0.0
        %1103 = vmatprep.mubr.f32.mxu0 0.0
        %1104 = vmatmul.mubr.f32.gmra.mrb[0].mxu0 %v1037
        %v1105 = vpop.f32.mrb[0].mxu0
        %v1106 = vadd.f32 0.0, %v1105
        %v1107 = vpop.f32.mrb[0].mxu0
        %1108 = vdwg.mxu0
        %v1109 = vadd.f32 %v513, %v1106
        %v1110 = vxor.u32 %v1109, 2147483648
        %v1111 = vmul.f32 %v1110, 1.442695
        %v1112 = vpow.pop %v1111
        %v1113 = vadd.f32 %v1112, 1.0
        %v1114 = vrcp.pop %v1113
        %v1115 = vmul.f32 1.0, %v1114
        %v1116 = vmul.f32 %v1115, 2.0
        %v1117 = vsub.f32 %v1116, 1.0
        %v1118 = vmul.f32 %v1115, %v1027
        %1120 = vrot.lane.b32.xlu0 %v1117, 64
        %v1121 = vpop.permute.xlu0 %1120
        %v1123 = vmul.f32 %v1115, %v1121
        %1125 = vrot.lane.b32.xlu0 %v1123, 32
        %v1126 = vpop.permute.xlu0 %1125
        %v1128 = vadd.f32 %v1118, %v1126
        %v1129 = vtanh.pop %v1128
        %1131 = vrot.lane.b32.xlu0 %v1129, 64
        %v1132 = vpop.permute.xlu0 %1131
        %v1134 = vmul.f32 %v1115, %v1132
        %1136 = vrot.lane.b32.xlu0 %v1134, 32
        %v1137 = vpop.permute.xlu0 %1136
        %v1138 = vsel %vm631, %v1137, 0
        %1140 = vmatprep.subr.mxu0 0.0
        %1141 = vmatpush1.msra.mxu0 %v627
        %1142 = vmatprep.subr.mxu0 0.0
        %1143 = vmatpush1.msra.mxu0 %v628
        %1144 = vmatprep.subr.mxu0 0.0
        %1145 = vmatpush1.msra.mxu0 %v629
        %1146 = vmatprep.subr.mxu0 0.0
        %1147 = vmatpush1.msra.mxu0 %v630
        %1148 = vmatprep.subr.mxu0 0.0
        %1149 = vmatpush1.msra.mxu0 0.0
        %1150 = vmatprep.subr.mxu0 0.0
        %1151 = vmatpush1.msra.mxu0 0.0
        %1152 = vmatprep.subr.mxu0 0.0
        %1153 = vmatpush1.msra.mxu0 0.0
        %1154 = vmatprep.subr.mxu0 0.0
        %1155 = vmatpush1.msra.mxu0 0.0
        %1156 = vmatprep.subr.mxu0 0.0
        %1157 = vmatpush1.msra.mxu0 0.0
        %1158 = vmatprep.subr.mxu0 0.0
        %1159 = vmatpush1.msra.mxu0 0.0
        %1160 = vmatprep.subr.mxu0 0.0
        %1161 = vmatpush1.msra.mxu0 0.0
        %1162 = vmatprep.subr.mxu0 0.0
        %1163 = vmatpush1.msra.mxu0 0.0
        %1164 = vmatprep.subr.mxu0 0.0
        %1165 = vmatpush1.msra.mxu0 0.0
        %1166 = vmatprep.subr.mxu0 0.0
        %1167 = vmatpush1.msra.mxu0 0.0
        %1168 = vmatprep.subr.mxu0 0.0
        %1169 = vmatpush1.msra.mxu0 0.0
        %1170 = vmatprep.subr.mxu0 0.0
        %1171 = vmatpush1.msra.mxu0 0.0
        %1172 = vmatprep.subr.mxu0 0.0
        %1173 = vmatpush1.msra.mxu0 0.0
        %1174 = vmatprep.subr.mxu0 0.0
        %1175 = vmatpush1.msra.mxu0 0.0
        %1176 = vmatprep.subr.mxu0 0.0
        %1177 = vmatpush1.msra.mxu0 0.0
        %1178 = vmatprep.subr.mxu0 0.0
        %1179 = vmatpush1.msra.mxu0 0.0
        %1180 = vmatprep.subr.mxu0 0.0
        %1181 = vmatpush1.msra.mxu0 0.0
        %1182 = vmatprep.subr.mxu0 0.0
        %1183 = vmatpush1.msra.mxu0 0.0
        %1184 = vmatprep.subr.mxu0 0.0
        %1185 = vmatpush1.msra.mxu0 0.0
        %1186 = vmatprep.subr.mxu0 0.0
        %1187 = vmatpush1.msra.mxu0 0.0
        %1188 = vmatprep.subr.mxu0 0.0
        %1189 = vmatpush1.msra.mxu0 0.0
        %1190 = vmatprep.subr.mxu0 0.0
        %1191 = vmatpush1.msra.mxu0 0.0
        %1192 = vmatprep.subr.mxu0 0.0
        %1193 = vmatpush1.msra.mxu0 0.0
        %1194 = vmatprep.subr.mxu0 0.0
        %1195 = vmatpush1.msra.mxu0 0.0
        %1196 = vmatprep.subr.mxu0 0.0
        %1197 = vmatpush1.msra.mxu0 0.0
        %1198 = vmatprep.subr.mxu0 0.0
        %1199 = vmatpush1.msra.mxu0 0.0
        %1200 = vmatprep.subr.mxu0 0.0
        %1201 = vmatpush1.msra.mxu0 0.0
        %1202 = vmatprep.subr.mxu0 0.0
        %1203 = vmatpush1.msra.mxu0 0.0
        %1204 = vmatprep.mubr.f32.mxu0 0.0
        %1205 = vmatmul.mubr.f32.gmra.mrb[0].mxu0 %v1138
        %v1206 = vpop.f32.mrb[0].mxu0
        %v1207 = vadd.f32 0.0, %v1206
        %v1208 = vpop.f32.mrb[0].mxu0
        %1209 = vdwg.mxu0
        %v1210 = vadd.f32 %v518, %v1207
        %v1211 = vxor.u32 %v1210, 2147483648
        %v1212 = vmul.f32 %v1211, 1.442695
        %v1213 = vpow.pop %v1212
        %v1214 = vadd.f32 %v1213, 1.0
        %v1215 = vrcp.pop %v1214
        %v1216 = vmul.f32 1.0, %v1215
        %v1217 = vmul.f32 %v1216, 2.0
        %v1218 = vsub.f32 %v1217, 1.0
        %v1219 = vmul.f32 %v1216, %v1128
        %1221 = vrot.lane.b32.xlu0 %v1218, 64
        %v1222 = vpop.permute.xlu0 %1221
        %v1224 = vmul.f32 %v1216, %v1222
        %1226 = vrot.lane.b32.xlu0 %v1224, 32
        %v1227 = vpop.permute.xlu0 %1226
        %v1229 = vadd.f32 %v1219, %v1227
        %v1230 = vtanh.pop %v1229
        %1232 = vrot.lane.b32.xlu0 %v1230, 64
        %v1233 = vpop.permute.xlu0 %1232
        %v1235 = vmul.f32 %v1216, %v1233
        %1237 = vrot.lane.b32.xlu0 %v1235, 32
        %v1238 = vpop.permute.xlu0 %1237
        %v1239 = vsel %vm631, %v1238, 0
        %1241 = vmatprep.subr.mxu0 0.0
        %1242 = vmatpush1.msra.mxu0 %v627
        %1243 = vmatprep.subr.mxu0 0.0
        %1244 = vmatpush1.msra.mxu0 %v628
        %1245 = vmatprep.subr.mxu0 0.0
        %1246 = vmatpush1.msra.mxu0 %v629
        %1247 = vmatprep.subr.mxu0 0.0
        %1248 = vmatpush1.msra.mxu0 %v630
        %1249 = vmatprep.subr.mxu0 0.0
        %1250 = vmatpush1.msra.mxu0 0.0
        %1251 = vmatprep.subr.mxu0 0.0
        %1252 = vmatpush1.msra.mxu0 0.0
        %1253 = vmatprep.subr.mxu0 0.0
        %1254 = vmatpush1.msra.mxu0 0.0
        %1255 = vmatprep.subr.mxu0 0.0
        %1256 = vmatpush1.msra.mxu0 0.0
        %1257 = vmatprep.subr.mxu0 0.0
        %1258 = vmatpush1.msra.mxu0 0.0
        %1259 = vmatprep.subr.mxu0 0.0
        %1260 = vmatpush1.msra.mxu0 0.0
        %1261 = vmatprep.subr.mxu0 0.0
        %1262 = vmatpush1.msra.mxu0 0.0
        %1263 = vmatprep.subr.mxu0 0.0
        %1264 = vmatpush1.msra.mxu0 0.0
        %1265 = vmatprep.subr.mxu0 0.0
        %1266 = vmatpush1.msra.mxu0 0.0
        %1267 = vmatprep.subr.mxu0 0.0
        %1268 = vmatpush1.msra.mxu0 0.0
        %1269 = vmatprep.subr.mxu0 0.0
        %1270 = vmatpush1.msra.mxu0 0.0
        %1271 = vmatprep.subr.mxu0 0.0
        %1272 = vmatpush1.msra.mxu0 0.0
        %1273 = vmatprep.subr.mxu0 0.0
        %1274 = vmatpush1.msra.mxu0 0.0
        %1275 = vmatprep.subr.mxu0 0.0
        %1276 = vmatpush1.msra.mxu0 0.0
        %1277 = vmatprep.subr.mxu0 0.0
        %1278 = vmatpush1.msra.mxu0 0.0
        %1279 = vmatprep.subr.mxu0 0.0
        %1280 = vmatpush1.msra.mxu0 0.0
        %1281 = vmatprep.subr.mxu0 0.0
        %1282 = vmatpush1.msra.mxu0 0.0
        %1283 = vmatprep.subr.mxu0 0.0
        %1284 = vmatpush1.msra.mxu0 0.0
        %1285 = vmatprep.subr.mxu0 0.0
        %1286 = vmatpush1.msra.mxu0 0.0
        %1287 = vmatprep.subr.mxu0 0.0
        %1288 = vmatpush1.msra.mxu0 0.0
        %1289 = vmatprep.subr.mxu0 0.0
        %1290 = vmatpush1.msra.mxu0 0.0
        %1291 = vmatprep.subr.mxu0 0.0
        %1292 = vmatpush1.msra.mxu0 0.0
        %1293 = vmatprep.subr.mxu0 0.0
        %1294 = vmatpush1.msra.mxu0 0.0
        %1295 = vmatprep.subr.mxu0 0.0
        %1296 = vmatpush1.msra.mxu0 0.0
        %1297 = vmatprep.subr.mxu0 0.0
        %1298 = vmatpush1.msra.mxu0 0.0
        %1299 = vmatprep.subr.mxu0 0.0
        %1300 = vmatpush1.msra.mxu0 0.0
        %1301 = vmatprep.subr.mxu0 0.0
        %1302 = vmatpush1.msra.mxu0 0.0
        %1303 = vmatprep.subr.mxu0 0.0
        %1304 = vmatpush1.msra.mxu0 0.0
        %1305 = vmatprep.mubr.f32.mxu0 0.0
        %1306 = vmatmul.mubr.f32.gmra.mrb[0].mxu0 %v1239
        %v1307 = vpop.f32.mrb[0].mxu0
        %v1308 = vadd.f32 0.0, %v1307
        %v1309 = vpop.f32.mrb[0].mxu0
        %1310 = vdwg.mxu0
        %v1311 = vadd.f32 %v523, %v1308
        %v1312 = vxor.u32 %v1311, 2147483648
        %v1313 = vmul.f32 %v1312, 1.442695
        %v1314 = vpow.pop %v1313
        %v1315 = vadd.f32 %v1314, 1.0
        %v1316 = vrcp.pop %v1315
        %v1317 = vmul.f32 1.0, %v1316
        %v1318 = vmul.f32 %v1317, 2.0
        %v1319 = vsub.f32 %v1318, 1.0
        %v1320 = vmul.f32 %v1317, %v1229
        %1322 = vrot.lane.b32.xlu0 %v1319, 64
        %v1323 = vpop.permute.xlu0 %1322
        %v1325 = vmul.f32 %v1317, %v1323
        %1327 = vrot.lane.b32.xlu0 %v1325, 32
        %v1328 = vpop.permute.xlu0 %1327
        %v1330 = vadd.f32 %v1320, %v1328
        %v1331 = vtanh.pop %v1330
        %1333 = vrot.lane.b32.xlu0 %v1331, 64
        %v1334 = vpop.permute.xlu0 %1333
        %v1336 = vmul.f32 %v1317, %v1334
        %1338 = vrot.lane.b32.xlu0 %v1336, 32
        %v1339 = vpop.permute.xlu0 %1338
        %v1340 = vsel %vm631, %v1339, 0
        %1342 = vmatprep.subr.mxu0 0.0
        %1343 = vmatpush1.msra.mxu0 %v627
        %1344 = vmatprep.subr.mxu0 0.0
        %1345 = vmatpush1.msra.mxu0 %v628
        %1346 = vmatprep.subr.mxu0 0.0
        %1347 = vmatpush1.msra.mxu0 %v629
        %1348 = vmatprep.subr.mxu0 0.0
        %1349 = vmatpush1.msra.mxu0 %v630
        %1350 = vmatprep.subr.mxu0 0.0
        %1351 = vmatpush1.msra.mxu0 0.0
        %1352 = vmatprep.subr.mxu0 0.0
        %1353 = vmatpush1.msra.mxu0 0.0
        %1354 = vmatprep.subr.mxu0 0.0
        %1355 = vmatpush1.msra.mxu0 0.0
        %1356 = vmatprep.subr.mxu0 0.0
        %1357 = vmatpush1.msra.mxu0 0.0
        %1358 = vmatprep.subr.mxu0 0.0
        %1359 = vmatpush1.msra.mxu0 0.0
        %1360 = vmatprep.subr.mxu0 0.0
        %1361 = vmatpush1.msra.mxu0 0.0
        %1362 = vmatprep.subr.mxu0 0.0
        %1363 = vmatpush1.msra.mxu0 0.0
        %1364 = vmatprep.subr.mxu0 0.0
        %1365 = vmatpush1.msra.mxu0 0.0
        %1366 = vmatprep.subr.mxu0 0.0
        %1367 = vmatpush1.msra.mxu0 0.0
        %1368 = vmatprep.subr.mxu0 0.0
        %1369 = vmatpush1.msra.mxu0 0.0
        %1370 = vmatprep.subr.mxu0 0.0
        %1371 = vmatpush1.msra.mxu0 0.0
        %1372 = vmatprep.subr.mxu0 0.0
        %1373 = vmatpush1.msra.mxu0 0.0
        %1374 = vmatprep.subr.mxu0 0.0
        %1375 = vmatpush1.msra.mxu0 0.0
        %1376 = vmatprep.subr.mxu0 0.0
        %1377 = vmatpush1.msra.mxu0 0.0
        %1378 = vmatprep.subr.mxu0 0.0
        %1379 = vmatpush1.msra.mxu0 0.0
        %1380 = vmatprep.subr.mxu0 0.0
        %1381 = vmatpush1.msra.mxu0 0.0
        %1382 = vmatprep.subr.mxu0 0.0
        %1383 = vmatpush1.msra.mxu0 0.0
        %1384 = vmatprep.subr.mxu0 0.0
        %1385 = vmatpush1.msra.mxu0 0.0
        %1386 = vmatprep.subr.mxu0 0.0
        %1387 = vmatpush1.msra.mxu0 0.0
        %1388 = vmatprep.subr.mxu0 0.0
        %1389 = vmatpush1.msra.mxu0 0.0
        %1390 = vmatprep.subr.mxu0 0.0
        %1391 = vmatpush1.msra.mxu0 0.0
        %1392 = vmatprep.subr.mxu0 0.0
        %1393 = vmatpush1.msra.mxu0 0.0
        %1394 = vmatprep.subr.mxu0 0.0
        %1395 = vmatpush1.msra.mxu0 0.0
        %1396 = vmatprep.subr.mxu0 0.0
        %1397 = vmatpush1.msra.mxu0 0.0
        %1398 = vmatprep.subr.mxu0 0.0
        %1399 = vmatpush1.msra.mxu0 0.0
        %1400 = vmatprep.subr.mxu0 0.0
        %1401 = vmatpush1.msra.mxu0 0.0
        %1402 = vmatprep.subr.mxu0 0.0
        %1403 = vmatpush1.msra.mxu0 0.0
        %1404 = vmatprep.subr.mxu0 0.0
        %1405 = vmatpush1.msra.mxu0 0.0
        %1406 = vmatprep.mubr.f32.mxu0 0.0
        %1407 = vmatmul.mubr.f32.gmra.mrb[0].mxu0 %v1340
        %v1408 = vpop.f32.mrb[0].mxu0
        %v1409 = vadd.f32 0.0, %v1408
        %v1410 = vpop.f32.mrb[0].mxu0
        %1411 = vdwg.mxu0
        %v1412 = vadd.f32 %v528, %v1409
        %v1413 = vxor.u32 %v1412, 2147483648
        %v1414 = vmul.f32 %v1413, 1.442695
        %v1415 = vpow.pop %v1414
        %v1416 = vadd.f32 %v1415, 1.0
        %v1417 = vrcp.pop %v1416
        %v1418 = vmul.f32 1.0, %v1417
        %v1419 = vmul.f32 %v1418, 2.0
        %v1420 = vsub.f32 %v1419, 1.0
        %v1421 = vmul.f32 %v1418, %v1330
        %1423 = vrot.lane.b32.xlu0 %v1420, 64
        %v1424 = vpop.permute.xlu0 %1423
        %v1426 = vmul.f32 %v1418, %v1424
        %1428 = vrot.lane.b32.xlu0 %v1426, 32
        %v1429 = vpop.permute.xlu0 %1428
        %v1431 = vadd.f32 %v1421, %v1429
        %v1432 = vtanh.pop %v1431
        %1434 = vrot.lane.b32.xlu0 %v1432, 64
        %v1435 = vpop.permute.xlu0 %1434
        %v1437 = vmul.f32 %v1418, %v1435
        %v1438 = vld [vmem:[#allocation8] sm:$0xff]
        %v1439 = vld [vmem:[#allocation8 + $0x8] sm:$0xff]
        %v1440 = vld [vmem:[#allocation8 + $0x10] sm:$0xff]
        %v1441 = vld [vmem:[#allocation8 + $0x18] sm:$0xff]
        %v1442 = vld [vmem:[#allocation8 + $0x20] sm:$0xff]
        %v1443 = vld [vmem:[#allocation8 + $0x28] sm:$0xff]
        %v1444 = vld [vmem:[#allocation8 + $0x30] sm:$0xff]
        %v1445 = vld [vmem:[#allocation8 + $0x38] sm:$0xff]
        %1447 = vrot.lane.b32.xlu0 %v1437, 32
        %v1448 = vpop.permute.xlu0 %1447
        %v1449 = vsel %vm631, %v1448, 0
        %1451 = vmatprep.subr.mxu0 %v1439
        %1452 = vmatpush1.msra.mxu0 %v1438
        %1453 = vmatprep.subr.mxu0 %v1441
        %1454 = vmatpush1.msra.mxu0 %v1440
        %1455 = vmatprep.subr.mxu0 %v1443
        %1456 = vmatpush1.msra.mxu0 %v1442
        %1457 = vmatprep.subr.mxu0 %v1445
        %1458 = vmatpush1.msra.mxu0 %v1444
        %1459 = vmatprep.subr.mxu0 0.0
        %1460 = vmatpush1.msra.mxu0 0.0
        %1461 = vmatprep.subr.mxu0 0.0
        %1462 = vmatpush1.msra.mxu0 0.0
        %1463 = vmatprep.subr.mxu0 0.0
        %1464 = vmatpush1.msra.mxu0 0.0
        %1465 = vmatprep.subr.mxu0 0.0
        %1466 = vmatpush1.msra.mxu0 0.0
        %1467 = vmatprep.subr.mxu0 0.0
        %1468 = vmatpush1.msra.mxu0 0.0
        %1469 = vmatprep.subr.mxu0 0.0
        %1470 = vmatpush1.msra.mxu0 0.0
        %1471 = vmatprep.subr.mxu0 0.0
        %1472 = vmatpush1.msra.mxu0 0.0
        %1473 = vmatprep.subr.mxu0 0.0
        %1474 = vmatpush1.msra.mxu0 0.0
        %1475 = vmatprep.subr.mxu0 0.0
        %1476 = vmatpush1.msra.mxu0 0.0
        %1477 = vmatprep.subr.mxu0 0.0
        %1478 = vmatpush1.msra.mxu0 0.0
        %1479 = vmatprep.subr.mxu0 0.0
        %1480 = vmatpush1.msra.mxu0 0.0
        %1481 = vmatprep.subr.mxu0 0.0
        %1482 = vmatpush1.msra.mxu0 0.0
        %1483 = vmatprep.subr.mxu0 0.0
        %1484 = vmatpush1.msra.mxu0 0.0
        %1485 = vmatprep.subr.mxu0 0.0
        %1486 = vmatpush1.msra.mxu0 0.0
        %1487 = vmatprep.subr.mxu0 0.0
        %1488 = vmatpush1.msra.mxu0 0.0
        %1489 = vmatprep.subr.mxu0 0.0
        %1490 = vmatpush1.msra.mxu0 0.0
        %1491 = vmatprep.subr.mxu0 0.0
        %1492 = vmatpush1.msra.mxu0 0.0
        %1493 = vmatprep.subr.mxu0 0.0
        %1494 = vmatpush1.msra.mxu0 0.0
        %1495 = vmatprep.subr.mxu0 0.0
        %1496 = vmatpush1.msra.mxu0 0.0
        %1497 = vmatprep.subr.mxu0 0.0
        %1498 = vmatpush1.msra.mxu0 0.0
        %1499 = vmatprep.subr.mxu0 0.0
        %1500 = vmatpush1.msra.mxu0 0.0
        %1501 = vmatprep.subr.mxu0 0.0
        %1502 = vmatpush1.msra.mxu0 0.0
        %1503 = vmatprep.subr.mxu0 0.0
        %1504 = vmatpush1.msra.mxu0 0.0
        %1505 = vmatprep.subr.mxu0 0.0
        %1506 = vmatpush1.msra.mxu0 0.0
        %1507 = vmatprep.subr.mxu0 0.0
        %1508 = vmatpush1.msra.mxu0 0.0
        %1509 = vmatprep.subr.mxu0 0.0
        %1510 = vmatpush1.msra.mxu0 0.0
        %1511 = vmatprep.subr.mxu0 0.0
        %1512 = vmatpush1.msra.mxu0 0.0
        %1513 = vmatprep.subr.mxu0 0.0
        %1514 = vmatpush1.msra.mxu0 0.0
        %1515 = vmatprep.mubr.f32.mxu0 0.0
        %1516 = vmatmul.mubr.f32.gmra.mrb[0].mxu0 %v1449
        %v1517 = vpop.f32.mrb[0].mxu0
        %v1518 = vadd.f32 %v623, %v1517
        %v1519 = vpop.f32.mrb[0].mxu0
        %v1520 = vadd.f32 %v625, %v1519
        %1521 = vdwg.mxu0
        %v1522 = vmax.f32 %v1518, 0.0
        %v1523 = vmax.f32 %v1520, 0.0
        %v1525 = vlaneseq
        %v1526 = vshrl.u32 %v1525, 7
        %v1527 = vsub.s32 0, %v1526
        %v1528 = vrot.slane %v384, %v1527
        %v1529 = vlaneseq
        %v1530 = vshrl.u32 %v1529, 7
        %v1531 = vsub.s32 1, %v1530
        %v1532 = vrot.slane %v384, %v1531
        %v1535 = vmul.f32 %v1522, %v1528
        %v1536 = vmul.f32 %v1523, %v1532
        %v1537 = vadd.f32 %v1535, %v1536
        %1538 = vadd.xlane.f32.xlu0 %v1537
        %v1539 = vpop.xlane.xlu0 %1538
        %s1540 = sld [smem:[#allocation2]]
        %v1541 = vstv %s1540
        %v1542 = vadd.f32 %v1539, %v1541
        %v1544 = vlaneseq
        %v1545 = vand.u32 %v1544, 127
        %v1546 = vlaneseq
        %v1547 = vshrl.u32 %v1546, 7
        %v1548 = vsub.s32 %v1545, %v1547
        %v1549 = vrot.slane %v1542, %v1548
        %vm1551 = vcmask 57344
        %1552 = vst.msk [vmem:[%s377] sm:$0x1] %vm1551, %v1549
        %s1553 = sand.u32 %s214, 1
        %s1554 = scalar_lea.sflag [#allocation5], %s1553
        %s1555 = sand.u32 %s214, 1
        %s1556 = scalar_lea.vmem [#allocation11], %s1555
        // Predicated region
        $region69: #{tpu_custom_call.1} parent=51 // pred_check
          %p1557 = pneg %p224
        $region70: #{tpu_custom_call.1} parent=51 // pred_check_branch
          %1559 = sbr.rel (%p1557) target = $region72
        $region71: #{tpu_custom_call.1} parent=51 // pred_region
          %s1561 = ssub.s32 16, 16
          %1562 = vsyncadd %s1554, %s1561
          %s1563 = smul.addr %s28, 16
          %s1564 = scalar_lea.hbm %s8, %s1563
          %s1566 = sshll.u32 %s1556, 4
          %s1567 = int_to_ptr.vmem [resolvable:$true] %s1566
          %1569 = dma.vmem_to_hbm [thread:$0]  %s1567, 16, %s1564, %s1554
        $region72: #{tpu_custom_call.1} parent=51 // pred_fallthru
          _
      $region52: #{tpu_custom_call.1} parent=5 // pred_fallthru
        _
      %p1570 = scmp.le.s32.totalorder 2, %s23
      // Predicated region
      $region73: #{tpu_custom_call.1} parent=5 // pred_check
        %p1571 = pneg %p1570
      $region74: #{tpu_custom_call.1} parent=5 // pred_check_branch
        %1573 = sbr.rel (%p1571) target = $region76
      $region75: #{tpu_custom_call.1} parent=5 // pred_region
        %s1574 = ssub.s32 %s23, 2
        // Predicated region
        $region77: #{tpu_custom_call.1} parent=75 // pred_check
          %p1575 = pneg %p230
        $region78: #{tpu_custom_call.1} parent=75 // pred_check_branch
          %1577 = sbr.rel (%p1575) target = $region80
        $region79: #{tpu_custom_call.1} parent=75 // pred_region
          %s1578 = sand.u32 %s215, 1
          %s1579 = scalar_lea.sflag [#allocation5], %s1578
          %s1580 = sand.u32 %s215, 1
          %s1581 = scalar_lea.vmem [#allocation11], %s1580
          %1582 = dma.done %s1579, 16
        $region80: #{tpu_custom_call.1} parent=75 // pred_fallthru
          _
      $region76: #{tpu_custom_call.1} parent=5 // pred_fallthru
        _
    $region6: #{tpu_custom_call.1} parent=1 // loop_footer
      %s27 = sadd.s32 1, %s23
    $region7: #{tpu_custom_call.1} parent=1 // loop_footer_branch
      %22 = sbr.rel target = $region3
    $region8: #{tpu_custom_call.1} parent=1 // loop_exit
      _
    %1583 = vsyncpa [#allocation4], 1
    %s1584 = scalar_lea.sflag [#allocation4], 1
    %1585 = vsyncpa %s1584, 1
    %1586 = vsyncpa [#allocation7], 1
    %1587 = vsyncpa [#allocation10], 1
    %1588 = vsyncpa [#allocation5], 1
    %s1589 = scalar_lea.sflag [#allocation5], 1
    %1590 = vsyncpa %s1589, 1

</llo_original>
